<compile_context>
chip_gen: v7x
topology: tpu7x:2x2x1
jax: 0.10.0
libtpu: 0.0.40
codegen_flags: <defaults>
</compile_context>

<pallas_src>
import jax
import jax.numpy as jnp
from jax.experimental import pallas as pl
from jax.experimental.pallas import tpu as pltpu


def _round_up(x, m):
    return (x + m - 1) // m * m


def _cdiv(a, b):
    return (a + b - 1) // b


def _pick_vmem_limit():
    # ~75% of physical VMEM, capped at 100 MiB: ~96-100 MiB on v5e/v6e (128 MiB),
    # ~48 MiB on v7x (64 MiB).  Conservative fallback if the query fails.
    try:
        cap = pltpu.get_tpu_info().vmem_capacity_bytes
        return int(min(cap * 3 // 4, 100 * 1024 * 1024))
    except Exception:
        return 48 * 1024 * 1024


def _make_convnet_kernel(L, time_chunk, n_max, num_chunks):
    """Fused conv + bias + ReLU + max-over-time + FC for one batch tile.

    Ref shapes:
      x_ref    : (TB, num_chunks*TC + n_max - 1, E)  bf16  time zero-padded embeddings
      w_ref    : (n_max*E, C_pad)                    bf16  fused im2col conv weights
      bias_ref : (1, C_pad)                          f32   conv bias
      lout_ref : (1, C_pad)                          i32   per-channel valid output length
      fcw_ref  : (C_pad, OUT_pad)                    bf16  pre-transposed FC weight
      fcb_ref  : (1, OUT_pad)                        f32   FC bias
      out_ref  : (TB, OUT_pad)                       f32
    """
    TC = time_chunk
    min_lout = L - n_max + 1     # first time index invalid for the widest filter

    def kernel(x_ref, w_ref, bias_ref, lout_ref, fcw_ref, fcb_ref, out_ref):
        C_pad = w_ref.shape[1]
        w = w_ref[...]                           # (K, C_pad) bf16
        bias = bias_ref[...]                     # (1, C_pad) f32
        lout = lout_ref[...]                     # (1, C_pad) i32
        dims = (((2,), (0,)), ((), ()))          # contract the im2col K axis

        feat = None                              # running (TB, C_pad) f32 max-over-time
        for c in range(num_chunks):              # static unrolled time-chunk loop
            t0 = c * TC
            # im2col for TC output positions: concat the n_max shifted slabs along E.
            slabs = [x_ref[:, t0 + i: t0 + i + TC, :] for i in range(n_max)]
            lhs = jnp.concatenate(slabs, axis=-1)            # (TB, TC, n_max*E) bf16
            # Single K = n_max*E MXU matmul per chunk, f32 accumulation.
            acc = jax.lax.dot_general(lhs, w, dimension_numbers=dims,
                                      preferred_element_type=jnp.float32)
            act = jnp.maximum(acc + bias, 0.0)               # (TB, TC, C_pad) f32
            # Zero invalid tail / padded positions only in chunks that contain any.
            # ReLU guarantees act >= 0, so 0 is neutral for the running max.
            if t0 + TC > min_lout:
                t_idx = jax.lax.broadcasted_iota(jnp.int32, (TC, C_pad), 0) + t0
                act = act * (t_idx < lout).astype(jnp.float32)
            cmax = jnp.max(act, axis=1)                      # (TB, C_pad) f32
            feat = cmax if feat is None else jnp.maximum(feat, cmax)

        # FC in bf16 (single MXU pass), f32 accumulation + bias.
        out = jnp.dot(feat.astype(jnp.bfloat16), fcw_ref[...],
                      preferred_element_type=jnp.float32) + fcb_ref[...]
        out_ref[...] = out.astype(out_ref.dtype)

    return kernel


def convnet_forward(tokens, embed_matrix, conv_params, fc_w, fc_b,
                    filter_list, num_filters, output_dim, *,
                    batch_tile=128, time_chunk=16):
    """tokens: (B, L) int32 token ids.  Returns (B, output_dim) f32 logits."""
    filter_list = list(filter_list)
    B, L = tokens.shape
    E = embed_matrix.shape[1]
    F = num_filters
    nf = len(filter_list)
    n_max = max(filter_list)
    assert L >= n_max, "sequence shorter than the largest conv filter"

    C = nf * F
    C_pad = _round_up(C, 128)                 # lane-dense fused conv feature width
    OUT_pad = _round_up(output_dim, 128)      # lane-dense logits width
    K = n_max * E                             # fused im2col contraction depth

    # Batch tile: multiple of 8; keep >= 2 grid steps when the batch allows so the
    # "parallel" grid axis can be split across v7x's two TensorCores.
    B8 = _round_up(B, 8)
    TB = min(_round_up(batch_tile, 8), B8)
    if B8 > 8 and _cdiv(B8, TB) < 2:
        TB = _round_up(_cdiv(B8, 2), 8)
    B_pad = _round_up(B, TB)

    # Time chunking: running max over TC-row chunks caps the live f32 activation
    # slab at (TB, TC, C_pad) instead of (TB, L, C_pad).
    TC = max(8, min(_round_up(time_chunk, 8), _round_up(L, 8)))
    num_chunks = _cdiv(L, TC)
    L_pad = num_chunks * TC + n_max - 1       # zero-padded so every tap slice is full

    # ---- glue: bf16 embedding gather (XLA) + parameter packing ----
    x_emb = jnp.take(embed_matrix.astype(jnp.bfloat16), tokens, axis=0)   # (B, L, E)
    x_pad = jnp.zeros((B_pad, L_pad, E), jnp.bfloat16).at[:B, :L, :].set(x_emb)

    # Fused im2col conv weights: row i*E + e, col j*F + f  <-  w_j[f, i, e]
    # (taps i >= n_j stay zero); per-channel bias and valid output length.
    w_fused = jnp.zeros((K, C_pad), jnp.bfloat16)
    bias = jnp.zeros((1, C_pad), jnp.float32)
    lout = jnp.zeros((1, C_pad), jnp.int32)
    for j, ((w, b), n) in enumerate(zip(conv_params, filter_list)):
        w_t = jnp.transpose(w, (1, 2, 0)).astype(jnp.bfloat16).reshape(n * E, F)
        w_fused = w_fused.at[:n * E, j * F:(j + 1) * F].set(w_t)
        bias = bias.at[0, j * F:(j + 1) * F].set(b.astype(jnp.float32))
        lout = lout.at[0, j * F:(j + 1) * F].set(L - n + 1)

    # Pre-transposed, zero-padded FC parameters (bf16 weight: single MXU pass).
    fcw_t = jnp.zeros((C_pad, OUT_pad), jnp.bfloat16)
    fcw_t = fcw_t.at[:C, :output_dim].set(fc_w.T.astype(jnp.bfloat16))
    fcb_p = jnp.zeros((1, OUT_pad), jnp.float32)
    fcb_p = fcb_p.at[0, :output_dim].set(fc_b.astype(jnp.float32))

    kernel = _make_convnet_kernel(L, TC, n_max, num_chunks)
    grid = (B_pad // TB,)
    out_shape = jax.ShapeDtypeStruct((B_pad, OUT_pad), jnp.float32)
    compiler_params = pltpu.CompilerParams(
        dimension_semantics=("parallel",),
        vmem_limit_bytes=_pick_vmem_limit())

    def call(single_buffer_params):
        # Parameter blocks have constant index maps (DMA'd once); Buffered(1)
        # additionally drops their second, unused VMEM buffer.
        pm = dict(pipeline_mode=pl.Buffered(1)) if single_buffer_params else {}
        in_specs = [
            pl.BlockSpec((TB, L_pad, E), lambda b: (b, 0, 0)),        # activations (tiled)
            pl.BlockSpec((K, C_pad), lambda b: (0, 0), **pm),         # fused conv weights
            pl.BlockSpec((1, C_pad), lambda b: (0, 0), **pm),         # conv bias
            pl.BlockSpec((1, C_pad), lambda b: (0, 0), **pm),         # per-channel valid len
            pl.BlockSpec((C_pad, OUT_pad), lambda b: (0, 0), **pm),   # fc weight (pre-T, bf16)
            pl.BlockSpec((1, OUT_pad), lambda b: (0, 0), **pm),       # fc bias
        ]
        return pl.pallas_call(
            kernel, grid=grid, in_specs=in_specs,
            out_specs=pl.BlockSpec((TB, OUT_pad), lambda b: (b, 0)),
            out_shape=out_shape, compiler_params=compiler_params,
        )(x_pad, w_fused, bias, lout, fcw_t, fcb_p)

    try:
        out = call(True)
    except Exception:
        # pipeline_mode not accepted on this JAX version -> default double-buffering.
        out = call(False)

    return out[:B, :output_dim]


def _reference(tokens, embed_matrix, conv_params, fc_w, fc_b, filter_list):
    """Pure-JAX f32 reference of the PyTorch forward (eval-mode dropout)."""
    x = embed_matrix[tokens].astype(jnp.float32)                 # (B, L, E)
    feats = []
    for (w, b), n in zip(conv_params, filter_list):
        Lout = x.shape[1] - n + 1
        cols = jnp.stack([x[:, i:i + Lout, :] for i in range(n)], axis=2)  # (B,Lout,n,E)
        conv = jnp.einsum('btie,fie->btf', cols, w) + b
        conv = jnp.maximum(conv, 0.0)
        feats.append(conv.max(axis=1))
    pen = jnp.concatenate(feats, axis=-1)
    return pen @ fc_w.T + fc_b


if __name__ == "__main__":
    # Small shapes consistent with the module.  B does not divide the batch tile and
    # L spans two time chunks, so padding, multi-step grid, chunked running max and
    # the tail-mask path are all exercised.
    B, L = 13, 16                # batch, max sentence length
    vocab, E = 50, 32            # embed_matrix: (size_vocab, embedding_dim)
    num_filters = 8
    filter_list = [3, 4, 5]
    output_dim = 4

    key = jax.random.PRNGKey(0)
    k_tok, k_emb, k_fcw, k_fcb, *k_conv = jax.random.split(key, 5 + 2 * len(filter_list))

    tokens = jax.random.randint(k_tok, (B, L), 0, vocab, dtype=jnp.int32)
    embed_matrix = jax.random.normal(k_emb, (vocab, E), jnp.float32) * 0.1

    conv_params = []
    for j, n in enumerate(filter_list):
        w = jax.random.normal(k_conv[2 * j], (num_filters, n, E), jnp.float32) * 0.1
        b = jax.random.normal(k_conv[2 * j + 1], (num_filters,), jnp.float32) * 0.1
        conv_params.append((w, b))

    fc_w = jax.random.normal(k_fcw, (output_dim, num_filters * len(filter_list)),
                             jnp.float32) * 0.1
    fc_b = jax.random.normal(k_fcb, (output_dim,), jnp.float32) * 0.1

    out = convnet_forward(tokens, embed_matrix, conv_params, fc_w, fc_b,
                          filter_list, num_filters, output_dim,
                          batch_tile=8, time_chunk=8)
    out = jax.block_until_ready(out)

    ref = _reference(tokens, embed_matrix, conv_params, fc_w, fc_b, filter_list)
    assert out.shape == (B, output_dim)
    # bf16 embeddings / conv / FC weights with f32 accumulation -> loose tolerance.
    assert jnp.allclose(out, ref, atol=2e-2, rtol=2e-2), "mismatch vs reference"
    print("KERNEL_OK")
</pallas_src>

<mosaic_0001>
module attributes {stable_mosaic.version = 11 : i64} {
  func.func @kernel(%arg0: i32, %arg1: memref<8x20x32xbf16, #tpu.memory_space<vmem>>, %arg2: memref<160x128xbf16, #tpu.memory_space<vmem>>, %arg3: memref<1x128xf32, #tpu.memory_space<vmem>>, %arg4: memref<1x128xi32, #tpu.memory_space<vmem>>, %arg5: memref<128x128xbf16, #tpu.memory_space<vmem>>, %arg6: memref<1x128xf32, #tpu.memory_space<vmem>>, %arg7: memref<8x128xf32, #tpu.memory_space<vmem>>) attributes {dimension_semantics = [#tpu.dimension_semantics<parallel>], iteration_bounds = array<i64: 2>, scalar_prefetch = 0 : i64, scratch_operands = 0 : i64, tpu.core_type = #tpu.core_type<tc>, window_params = [{transform_indices = @transform_0, window_bounds = array<i64: 8, 20, 32>}, {pipeline_mode = #tpu.pipeline_mode<synchronous>, transform_indices = @transform_1, window_bounds = array<i64: 160, 128>}, {pipeline_mode = #tpu.pipeline_mode<synchronous>, transform_indices = @transform_2, window_bounds = array<i64: 1, 128>}, {pipeline_mode = #tpu.pipeline_mode<synchronous>, transform_indices = @transform_3, window_bounds = array<i64: 1, 128>}, {pipeline_mode = #tpu.pipeline_mode<synchronous>, transform_indices = @transform_4, window_bounds = array<i64: 128, 128>}, {pipeline_mode = #tpu.pipeline_mode<synchronous>, transform_indices = @transform_5, window_bounds = array<i64: 1, 128>}, {transform_indices = @transform_6, window_bounds = array<i64: 8, 128>}]} {
    %c0 = arith.constant 0 : index
    %c0_0 = arith.constant 0 : index
    %0 = vector.load %arg2[%c0, %c0_0] : memref<160x128xbf16, #tpu.memory_space<vmem>>, vector<160x128xbf16>
    %c0_1 = arith.constant 0 : index
    %c0_2 = arith.constant 0 : index
    %1 = vector.load %arg3[%c0_1, %c0_2] : memref<1x128xf32, #tpu.memory_space<vmem>>, vector<1x128xf32>
    %c0_3 = arith.constant 0 : index
    %c0_4 = arith.constant 0 : index
    %2 = vector.load %arg4[%c0_3, %c0_4] : memref<1x128xi32, #tpu.memory_space<vmem>>, vector<1x128xi32>
    %c0_5 = arith.constant 0 : index
    %c0_6 = arith.constant 0 : index
    %c0_7 = arith.constant 0 : index
    %3 = vector.load %arg1[%c0_5, %c0_6, %c0_7] : memref<8x20x32xbf16, #tpu.memory_space<vmem>>, vector<8x8x32xbf16>
    %c0_8 = arith.constant 0 : index
    %c1 = arith.constant 1 : index
    %c0_9 = arith.constant 0 : index
    %4 = vector.load %arg1[%c0_8, %c1, %c0_9] : memref<8x20x32xbf16, #tpu.memory_space<vmem>>, vector<8x8x32xbf16>
    %c0_10 = arith.constant 0 : index
    %c2 = arith.constant 2 : index
    %c0_11 = arith.constant 0 : index
    %5 = vector.load %arg1[%c0_10, %c2, %c0_11] : memref<8x20x32xbf16, #tpu.memory_space<vmem>>, vector<8x8x32xbf16>
    %c0_12 = arith.constant 0 : index
    %c3 = arith.constant 3 : index
    %c0_13 = arith.constant 0 : index
    %6 = vector.load %arg1[%c0_12, %c3, %c0_13] : memref<8x20x32xbf16, #tpu.memory_space<vmem>>, vector<8x8x32xbf16>
    %c0_14 = arith.constant 0 : index
    %c4 = arith.constant 4 : index
    %c0_15 = arith.constant 0 : index
    %7 = vector.load %arg1[%c0_14, %c4, %c0_15] : memref<8x20x32xbf16, #tpu.memory_space<vmem>>, vector<8x8x32xbf16>
    %8 = tpu.concatenate %3, %4, %5, %6, %7 in 2 : vector<8x8x32xbf16>, vector<8x8x32xbf16>, vector<8x8x32xbf16>, vector<8x8x32xbf16>, vector<8x8x32xbf16> -> vector<8x8x160xbf16>
    %cst = arith.constant dense<0.000000e+00> : vector<8x8x128xf32>
    %9 = tpu.matmul %8, %0, %cst {dimension_numbers = #tpu.dot_dimension_numbers<[2], [0], [0, 1], [1], [0, 0, 0, 1, 1, 1], [], []>} : vector<8x8x160xbf16>, vector<160x128xbf16>, vector<8x8x128xf32> -> vector<8x8x128xf32>
    %10 = vector.shape_cast %1 : vector<1x128xf32> to vector<1x1x128xf32>
    %11 = vector.broadcast %10 : vector<1x1x128xf32> to vector<8x8x128xf32>
    %12 = arith.addf %9, %11 : vector<8x8x128xf32>
    %cst_16 = arith.constant 0.000000e+00 : f32
    %13 = vector.broadcast %cst_16 : f32 to vector<8x8x128xf32>
    %14 = arith.maximumf %12, %13 : vector<8x8x128xf32>
    %cst_17 = arith.constant dense<0xFF800000> : vector<8x128xf32>
    %15 = vector.multi_reduction <maximumf>, %14, %cst_17 [1] : vector<8x8x128xf32> to vector<8x128xf32>
    %c0_18 = arith.constant 0 : index
    %c8 = arith.constant 8 : index
    %c0_19 = arith.constant 0 : index
    %16 = vector.load %arg1[%c0_18, %c8, %c0_19] : memref<8x20x32xbf16, #tpu.memory_space<vmem>>, vector<8x8x32xbf16>
    %c0_20 = arith.constant 0 : index
    %c9 = arith.constant 9 : index
    %c0_21 = arith.constant 0 : index
    %17 = vector.load %arg1[%c0_20, %c9, %c0_21] : memref<8x20x32xbf16, #tpu.memory_space<vmem>>, vector<8x8x32xbf16>
    %c0_22 = arith.constant 0 : index
    %c10 = arith.constant 10 : index
    %c0_23 = arith.constant 0 : index
    %18 = vector.load %arg1[%c0_22, %c10, %c0_23] : memref<8x20x32xbf16, #tpu.memory_space<vmem>>, vector<8x8x32xbf16>
    %c0_24 = arith.constant 0 : index
    %c11 = arith.constant 11 : index
    %c0_25 = arith.constant 0 : index
    %19 = vector.load %arg1[%c0_24, %c11, %c0_25] : memref<8x20x32xbf16, #tpu.memory_space<vmem>>, vector<8x8x32xbf16>
    %c0_26 = arith.constant 0 : index
    %c12 = arith.constant 12 : index
    %c0_27 = arith.constant 0 : index
    %20 = vector.load %arg1[%c0_26, %c12, %c0_27] : memref<8x20x32xbf16, #tpu.memory_space<vmem>>, vector<8x8x32xbf16>
    %21 = tpu.concatenate %16, %17, %18, %19, %20 in 2 : vector<8x8x32xbf16>, vector<8x8x32xbf16>, vector<8x8x32xbf16>, vector<8x8x32xbf16>, vector<8x8x32xbf16> -> vector<8x8x160xbf16>
    %cst_28 = arith.constant dense<0.000000e+00> : vector<8x8x128xf32>
    %22 = tpu.matmul %21, %0, %cst_28 {dimension_numbers = #tpu.dot_dimension_numbers<[2], [0], [0, 1], [1], [0, 0, 0, 1, 1, 1], [], []>} : vector<8x8x160xbf16>, vector<160x128xbf16>, vector<8x8x128xf32> -> vector<8x8x128xf32>
    %23 = vector.shape_cast %1 : vector<1x128xf32> to vector<1x1x128xf32>
    %24 = vector.broadcast %23 : vector<1x1x128xf32> to vector<8x8x128xf32>
    %25 = arith.addf %22, %24 : vector<8x8x128xf32>
    %cst_29 = arith.constant 0.000000e+00 : f32
    %26 = vector.broadcast %cst_29 : f32 to vector<8x8x128xf32>
    %27 = arith.maximumf %25, %26 : vector<8x8x128xf32>
    %28 = tpu.iota {dimensions = array<i32: 0>} : vector<8x128xi32>
    %c8_i32 = arith.constant 8 : i32
    %29 = vector.broadcast %c8_i32 : i32 to vector<8x128xi32>
    %30 = arith.addi %28, %29 : vector<8x128xi32>
    %31 = vector.broadcast %2 : vector<1x128xi32> to vector<8x128xi32>
    %32 = arith.cmpi slt, %30, %31 : vector<8x128xi32>
    %33 = arith.extui %32 : vector<8x128xi1> to vector<8x128xi32>
    %34 = arith.sitofp %33 : vector<8x128xi32> to vector<8x128xf32>
    %35 = vector.shape_cast %34 : vector<8x128xf32> to vector<1x8x128xf32>
    %36 = vector.broadcast %35 : vector<1x8x128xf32> to vector<8x8x128xf32>
    %37 = arith.mulf %27, %36 : vector<8x8x128xf32>
    %cst_30 = arith.constant dense<0xFF800000> : vector<8x128xf32>
    %38 = vector.multi_reduction <maximumf>, %37, %cst_30 [1] : vector<8x8x128xf32> to vector<8x128xf32>
    %39 = arith.maximumf %15, %38 : vector<8x128xf32>
    %40 = arith.truncf %39 : vector<8x128xf32> to vector<8x128xbf16>
    %c0_31 = arith.constant 0 : index
    %c0_32 = arith.constant 0 : index
    %41 = vector.load %arg5[%c0_31, %c0_32] : memref<128x128xbf16, #tpu.memory_space<vmem>>, vector<128x128xbf16>
    %cst_33 = arith.constant dense<0.000000e+00> : vector<8x128xf32>
    %42 = tpu.matmul %40, %41, %cst_33 {dimension_numbers = #tpu.dot_dimension_numbers<[1], [0], [0], [1], [0, 0, 1, 1], [], []>} : vector<8x128xbf16>, vector<128x128xbf16>, vector<8x128xf32> -> vector<8x128xf32>
    %c0_34 = arith.constant 0 : index
    %c0_35 = arith.constant 0 : index
    %43 = vector.load %arg6[%c0_34, %c0_35] : memref<1x128xf32, #tpu.memory_space<vmem>>, vector<1x128xf32>
    %44 = vector.broadcast %43 : vector<1x128xf32> to vector<8x128xf32>
    %45 = arith.addf %42, %44 : vector<8x128xf32>
    %c0_36 = arith.constant 0 : index
    %c0_37 = arith.constant 0 : index
    %46 = vector.load %arg7[%c0_36, %c0_37] : memref<8x128xf32, #tpu.memory_space<vmem>>, vector<8x128xf32>
    tpu.vector_store %arg7[%c0_36, %c0_37], %45 {strides = array<i32>} : memref<8x128xf32, #tpu.memory_space<vmem>>, vector<8x128xf32>,
    return
  }
  func.func @transform_0(%arg0: i32) -> (i32, i32, i32) {
    %c0_i32 = arith.constant 0 : i32
    %c0_i32_0 = arith.constant 0 : i32
    %c0_i32_1 = arith.constant 0 : i32
    return %arg0, %c0_i32, %c0_i32_0 : i32, i32, i32
  }
  func.func @transform_1(%arg0: i32) -> (i32, i32) {
    %c0_i32 = arith.constant 0 : i32
    %c0_i32_0 = arith.constant 0 : i32
    %c0_i32_1 = arith.constant 0 : i32
    return %c0_i32, %c0_i32_0 : i32, i32
  }
  func.func @transform_2(%arg0: i32) -> (i32, i32) {
    %c0_i32 = arith.constant 0 : i32
    %c0_i32_0 = arith.constant 0 : i32
    %c0_i32_1 = arith.constant 0 : i32
    return %c0_i32, %c0_i32_0 : i32, i32
  }
  func.func @transform_3(%arg0: i32) -> (i32, i32) {
    %c0_i32 = arith.constant 0 : i32
    %c0_i32_0 = arith.constant 0 : i32
    %c0_i32_1 = arith.constant 0 : i32
    return %c0_i32, %c0_i32_0 : i32, i32
  }
  func.func @transform_4(%arg0: i32) -> (i32, i32) {
    %c0_i32 = arith.constant 0 : i32
    %c0_i32_0 = arith.constant 0 : i32
    %c0_i32_1 = arith.constant 0 : i32
    return %c0_i32, %c0_i32_0 : i32, i32
  }
  func.func @transform_5(%arg0: i32) -> (i32, i32) {
    %c0_i32 = arith.constant 0 : i32
    %c0_i32_0 = arith.constant 0 : i32
    %c0_i32_1 = arith.constant 0 : i32
    return %c0_i32, %c0_i32_0 : i32, i32
  }
  func.func @transform_6(%arg0: i32) -> (i32, i32) {
    %c0_i32 = arith.constant 0 : i32
    %c0_i32_0 = arith.constant 0 : i32
    return %arg0, %c0_i32 : i32, i32
  }
}

module attributes {stable_mosaic.version = 11 : i64} {
  func.func @kernel(%arg0: i32, %arg1: memref<8x20x32xbf16, #tpu.memory_space<vmem>>, %arg2: memref<160x128xbf16, #tpu.memory_space<vmem>>, %arg3: memref<1x128xf32, #tpu.memory_space<vmem>>, %arg4: memref<1x128xi32, #tpu.memory_space<vmem>>, %arg5: memref<128x128xbf16, #tpu.memory_space<vmem>>, %arg6: memref<1x128xf32, #tpu.memory_space<vmem>>, %arg7: memref<8x128xf32, #tpu.memory_space<vmem>>) attributes {dimension_semantics = [#tpu.dimension_semantics<parallel>], iteration_bounds = array<i64: 2>, scalar_prefetch = 0 : i64, scratch_operands = 0 : i64, tpu.core_type = #tpu.core_type<tc>, window_params = [{transform_indices = @transform_0, window_bounds = array<i64: 8, 20, 32>}, {pipeline_mode = #tpu.pipeline_mode<synchronous>, transform_indices = @transform_1, window_bounds = array<i64: 160, 128>}, {pipeline_mode = #tpu.pipeline_mode<synchronous>, transform_indices = @transform_2, window_bounds = array<i64: 1, 128>}, {pipeline_mode = #tpu.pipeline_mode<synchronous>, transform_indices = @transform_3, window_bounds = array<i64: 1, 128>}, {pipeline_mode = #tpu.pipeline_mode<synchronous>, transform_indices = @transform_4, window_bounds = array<i64: 128, 128>}, {pipeline_mode = #tpu.pipeline_mode<synchronous>, transform_indices = @transform_5, window_bounds = array<i64: 1, 128>}, {transform_indices = @transform_6, window_bounds = array<i64: 8, 128>}]} {
    %c0 = arith.constant 0 : index
    %c0_0 = arith.constant 0 : index
    %0 = vector.load %arg2[%c0, %c0_0] : memref<160x128xbf16, #tpu.memory_space<vmem>>, vector<160x128xbf16>
    %c0_1 = arith.constant 0 : index
    %c0_2 = arith.constant 0 : index
    %1 = vector.load %arg3[%c0_1, %c0_2] : memref<1x128xf32, #tpu.memory_space<vmem>>, vector<1x128xf32>
    %c0_3 = arith.constant 0 : index
    %c0_4 = arith.constant 0 : index
    %2 = vector.load %arg4[%c0_3, %c0_4] : memref<1x128xi32, #tpu.memory_space<vmem>>, vector<1x128xi32>
    %c0_5 = arith.constant 0 : index
    %c0_6 = arith.constant 0 : index
    %c0_7 = arith.constant 0 : index
    %3 = vector.load %arg1[%c0_5, %c0_6, %c0_7] : memref<8x20x32xbf16, #tpu.memory_space<vmem>>, vector<8x8x32xbf16>
    %c0_8 = arith.constant 0 : index
    %c1 = arith.constant 1 : index
    %c0_9 = arith.constant 0 : index
    %4 = vector.load %arg1[%c0_8, %c1, %c0_9] : memref<8x20x32xbf16, #tpu.memory_space<vmem>>, vector<8x8x32xbf16>
    %c0_10 = arith.constant 0 : index
    %c2 = arith.constant 2 : index
    %c0_11 = arith.constant 0 : index
    %5 = vector.load %arg1[%c0_10, %c2, %c0_11] : memref<8x20x32xbf16, #tpu.memory_space<vmem>>, vector<8x8x32xbf16>
    %c0_12 = arith.constant 0 : index
    %c3 = arith.constant 3 : index
    %c0_13 = arith.constant 0 : index
    %6 = vector.load %arg1[%c0_12, %c3, %c0_13] : memref<8x20x32xbf16, #tpu.memory_space<vmem>>, vector<8x8x32xbf16>
    %c0_14 = arith.constant 0 : index
    %c4 = arith.constant 4 : index
    %c0_15 = arith.constant 0 : index
    %7 = vector.load %arg1[%c0_14, %c4, %c0_15] : memref<8x20x32xbf16, #tpu.memory_space<vmem>>, vector<8x8x32xbf16>
    %8 = tpu.concatenate %3, %4, %5, %6, %7 in 2 : vector<8x8x32xbf16>, vector<8x8x32xbf16>, vector<8x8x32xbf16>, vector<8x8x32xbf16>, vector<8x8x32xbf16> -> vector<8x8x160xbf16>
    %cst = arith.constant dense<0.000000e+00> : vector<8x8x128xf32>
    %9 = tpu.matmul %8, %0, %cst {dimension_numbers = #tpu.dot_dimension_numbers<[2], [0], [0, 1], [1], [0, 0, 0, 1, 1, 1], [], []>} : vector<8x8x160xbf16>, vector<160x128xbf16>, vector<8x8x128xf32> -> vector<8x8x128xf32>
    %10 = vector.shape_cast %1 : vector<1x128xf32> to vector<1x1x128xf32>
    %11 = vector.broadcast %10 : vector<1x1x128xf32> to vector<8x8x128xf32>
    %12 = arith.addf %9, %11 : vector<8x8x128xf32>
    %cst_16 = arith.constant 0.000000e+00 : f32
    %13 = vector.broadcast %cst_16 : f32 to vector<8x8x128xf32>
    %14 = arith.maximumf %12, %13 : vector<8x8x128xf32>
    %cst_17 = arith.constant dense<0xFF800000> : vector<8x128xf32>
    %15 = vector.multi_reduction <maximumf>, %14, %cst_17 [1] : vector<8x8x128xf32> to vector<8x128xf32>
    %c0_18 = arith.constant 0 : index
    %c8 = arith.constant 8 : index
    %c0_19 = arith.constant 0 : index
    %16 = vector.load %arg1[%c0_18, %c8, %c0_19] : memref<8x20x32xbf16, #tpu.memory_space<vmem>>, vector<8x8x32xbf16>
    %c0_20 = arith.constant 0 : index
    %c9 = arith.constant 9 : index
    %c0_21 = arith.constant 0 : index
    %17 = vector.load %arg1[%c0_20, %c9, %c0_21] : memref<8x20x32xbf16, #tpu.memory_space<vmem>>, vector<8x8x32xbf16>
    %c0_22 = arith.constant 0 : index
    %c10 = arith.constant 10 : index
    %c0_23 = arith.constant 0 : index
    %18 = vector.load %arg1[%c0_22, %c10, %c0_23] : memref<8x20x32xbf16, #tpu.memory_space<vmem>>, vector<8x8x32xbf16>
    %c0_24 = arith.constant 0 : index
    %c11 = arith.constant 11 : index
    %c0_25 = arith.constant 0 : index
    %19 = vector.load %arg1[%c0_24, %c11, %c0_25] : memref<8x20x32xbf16, #tpu.memory_space<vmem>>, vector<8x8x32xbf16>
    %c0_26 = arith.constant 0 : index
    %c12 = arith.constant 12 : index
    %c0_27 = arith.constant 0 : index
    %20 = vector.load %arg1[%c0_26, %c12, %c0_27] : memref<8x20x32xbf16, #tpu.memory_space<vmem>>, vector<8x8x32xbf16>
    %21 = tpu.concatenate %16, %17, %18, %19, %20 in 2 : vector<8x8x32xbf16>, vector<8x8x32xbf16>, vector<8x8x32xbf16>, vector<8x8x32xbf16>, vector<8x8x32xbf16> -> vector<8x8x160xbf16>
    %cst_28 = arith.constant dense<0.000000e+00> : vector<8x8x128xf32>
    %22 = tpu.matmul %21, %0, %cst_28 {dimension_numbers = #tpu.dot_dimension_numbers<[2], [0], [0, 1], [1], [0, 0, 0, 1, 1, 1], [], []>} : vector<8x8x160xbf16>, vector<160x128xbf16>, vector<8x8x128xf32> -> vector<8x8x128xf32>
    %23 = vector.shape_cast %1 : vector<1x128xf32> to vector<1x1x128xf32>
    %24 = vector.broadcast %23 : vector<1x1x128xf32> to vector<8x8x128xf32>
    %25 = arith.addf %22, %24 : vector<8x8x128xf32>
    %cst_29 = arith.constant 0.000000e+00 : f32
    %26 = vector.broadcast %cst_29 : f32 to vector<8x8x128xf32>
    %27 = arith.maximumf %25, %26 : vector<8x8x128xf32>
    %28 = tpu.iota {dimensions = array<i32: 0>} : vector<8x128xi32>
    %c8_i32 = arith.constant 8 : i32
    %29 = vector.broadcast %c8_i32 : i32 to vector<8x128xi32>
    %30 = arith.addi %28, %29 : vector<8x128xi32>
    %31 = vector.broadcast %2 : vector<1x128xi32> to vector<8x128xi32>
    %32 = arith.cmpi slt, %30, %31 : vector<8x128xi32>
    %33 = arith.extui %32 : vector<8x128xi1> to vector<8x128xi32>
    %34 = arith.sitofp %33 : vector<8x128xi32> to vector<8x128xf32>
    %35 = vector.shape_cast %34 : vector<8x128xf32> to vector<1x8x128xf32>
    %36 = vector.broadcast %35 : vector<1x8x128xf32> to vector<8x8x128xf32>
    %37 = arith.mulf %27, %36 : vector<8x8x128xf32>
    %cst_30 = arith.constant dense<0xFF800000> : vector<8x128xf32>
    %38 = vector.multi_reduction <maximumf>, %37, %cst_30 [1] : vector<8x8x128xf32> to vector<8x128xf32>
    %39 = arith.maximumf %15, %38 : vector<8x128xf32>
    %40 = arith.truncf %39 : vector<8x128xf32> to vector<8x128xbf16>
    %c0_31 = arith.constant 0 : index
    %c0_32 = arith.constant 0 : index
    %41 = vector.load %arg5[%c0_31, %c0_32] : memref<128x128xbf16, #tpu.memory_space<vmem>>, vector<128x128xbf16>
    %cst_33 = arith.constant dense<0.000000e+00> : vector<8x128xf32>
    %42 = tpu.matmul %40, %41, %cst_33 {dimension_numbers = #tpu.dot_dimension_numbers<[1], [0], [0], [1], [0, 0, 1, 1], [], []>} : vector<8x128xbf16>, vector<128x128xbf16>, vector<8x128xf32> -> vector<8x128xf32>
    %c0_34 = arith.constant 0 : index
    %c0_35 = arith.constant 0 : index
    %43 = vector.load %arg6[%c0_34, %c0_35] : memref<1x128xf32, #tpu.memory_space<vmem>>, vector<1x128xf32>
    %44 = vector.broadcast %43 : vector<1x128xf32> to vector<8x128xf32>
    %45 = arith.addf %42, %44 : vector<8x128xf32>
    %c0_36 = arith.constant 0 : index
    %c0_37 = arith.constant 0 : index
    %46 = vector.load %arg7[%c0_36, %c0_37] : memref<8x128xf32, #tpu.memory_space<vmem>>, vector<8x128xf32>
    tpu.vector_store %arg7[%c0_36, %c0_37], %45 {strides = array<i32>} : memref<8x128xf32, #tpu.memory_space<vmem>>, vector<8x128xf32>,
    return
  }
  func.func @transform_0(%arg0: i32) -> (i32, i32, i32) {
    %c0_i32 = arith.constant 0 : i32
    %c0_i32_0 = arith.constant 0 : i32
    %c0_i32_1 = arith.constant 0 : i32
    return %arg0, %c0_i32, %c0_i32_0 : i32, i32, i32
  }
  func.func @transform_1(%arg0: i32) -> (i32, i32) {
    %c0_i32 = arith.constant 0 : i32
    %c0_i32_0 = arith.constant 0 : i32
    %c0_i32_1 = arith.constant 0 : i32
    return %c0_i32, %c0_i32_0 : i32, i32
  }
  func.func @transform_2(%arg0: i32) -> (i32, i32) {
    %c0_i32 = arith.constant 0 : i32
    %c0_i32_0 = arith.constant 0 : i32
    %c0_i32_1 = arith.constant 0 : i32
    return %c0_i32, %c0_i32_0 : i32, i32
  }
  func.func @transform_3(%arg0: i32) -> (i32, i32) {
    %c0_i32 = arith.constant 0 : i32
    %c0_i32_0 = arith.constant 0 : i32
    %c0_i32_1 = arith.constant 0 : i32
    return %c0_i32, %c0_i32_0 : i32, i32
  }
  func.func @transform_4(%arg0: i32) -> (i32, i32) {
    %c0_i32 = arith.constant 0 : i32
    %c0_i32_0 = arith.constant 0 : i32
    %c0_i32_1 = arith.constant 0 : i32
    return %c0_i32, %c0_i32_0 : i32, i32
  }
  func.func @transform_5(%arg0: i32) -> (i32, i32) {
    %c0_i32 = arith.constant 0 : i32
    %c0_i32_0 = arith.constant 0 : i32
    %c0_i32_1 = arith.constant 0 : i32
    return %c0_i32, %c0_i32_0 : i32, i32
  }
  func.func @transform_6(%arg0: i32) -> (i32, i32) {
    %c0_i32 = arith.constant 0 : i32
    %c0_i32_0 = arith.constant 0 : i32
    return %arg0, %c0_i32 : i32, i32
  }
}

</mosaic_0001>

<llo_original>
// kernel: tpu_custom_call.1
$region0: #{tpu_custom_call.1}
  #allocation0 [shape = 'u32[]', space=smem, size = 0x4, offset = 0x4, fixed_abs, tag = 'smem constant byte address 0x4 - core index']
  #allocation1 [shape = 'u32[144,128]{1,0:T(1,128)}', space=vmem, size = 0x12000, scoped, tag = 'internal scratch']
  %s0 = inlined_call_operand.vmem [shape: bf16[16,20,32], index: 0, kind: input, shape index: {}]
  %s1 = inlined_call_operand.vmem [shape: bf16[160,128], index: 1, kind: input, shape index: {}]
  %s2 = inlined_call_operand.vmem [shape: f32[1,128], index: 2, kind: input, shape index: {}]
  %s3 = inlined_call_operand.vmem [shape: s32[1,128], index: 3, kind: input, shape index: {}]
  %s4 = inlined_call_operand.vmem [shape: bf16[128,128], index: 4, kind: input, shape index: {}]
  %s5 = inlined_call_operand.vmem [shape: f32[1,128], index: 5, kind: input, shape index: {}]
  %s6 = inlined_call_operand.hbm [shape: f32[16,128], index: 6, kind: output, shape index: {}]
  %s7 = sld [smem:[#allocation0]]
  $region57: #{tpu_custom_call.1} parent=0
    _
  %s9 = ssub.s32 1, %s7
  %s10 = scalar_select 0, %s9, %s7
  $region1: #{tpu_custom_call.1} parent=0
    #allocation2 [shape = 'u8[8192]{0}', space=vmem, size = 0x2000, scoped, tag = 'output window, operand 0']
    #allocation3 [shape = 's32[2]{0}', space=sflag, size = 0x8, scoped, tag = 'scoped memory for tpu_custom_call.1']
    %11 = vsyncpa [#allocation3], 0
    %s12 = scalar_lea.sflag [#allocation3], 1
    %13 = vsyncpa %s12, 0
    loop: start=0, step=1, limit=4
    $region2: #{tpu_custom_call.1} parent=1 // loop_pre_header
      _
    $region3: #{tpu_custom_call.1} parent=1 // loop_header
      %s15 = sphi 0, %s19
      %p16 = scmp.ge.s32.totalorder %s15, 4
      %s25 = sphi 0, %s27
      %s28 = sphi 0, %s25
      %s29 = sphi 0, %s28
      %s45 = sphi 0, %s29
      %s49 = sphi 0, %s49
      %s51 = sphi 0, %s49
      %s52 = sphi 0, %s51
      %s66 = sphi 0, %s52
      %s70 = sphi 0, %s70
      %s72 = sphi 0, %s70
      %s73 = sphi 0, %s72
      %s87 = sphi 0, %s73
      %s91 = sphi 0, %s91
      %s93 = sphi 0, %s91
      %s94 = sphi 0, %s93
      %s108 = sphi 0, %s94
      %s112 = sphi 0, %s112
      %s114 = sphi 0, %s112
      %s115 = sphi 0, %s114
      %s129 = sphi 0, %s115
      %s133 = sphi 0, %s133
      %s135 = sphi 0, %s133
      %s136 = sphi 0, %s135
      %s150 = sphi 0, %s136
      %s156 = sphi 0, %s158
      %s159 = sphi 0, %s156
      %s160 = sphi 0, %s159
      %s176 = sphi 0, %s160
    $region4: #{tpu_custom_call.1} parent=1 // loop_header_branch
      %18 = sbr.rel (%p16) target = $region8
    $region5: #{tpu_custom_call.1} parent=1 // loop_body
      %s20 = ssub.s32 %s15, 1
      %s21 = ssub.s32 %s15, 2
      %s22 = sadd.s32 %s15, 1
      %s23 = ssub.s32 %s15, %s22
      %p24 = scmp.eq.s32.totalorder %s23, 0
      %s26 = sadd.s32 %s25, 1
      %s27 = scalar_select %p24, %s25, %s26
      %p30 = pneg %p24
      %p31 = scmp.eq.s32.totalorder %s15, 1
      %p32 = por %p30, %p31
      %p33 = scmp.ne.s32.totalorder %s25, %s28
      %p34 = scmp.eq.s32.totalorder %s15, 0
      %p35 = por %p33, %p34
      %p36 = scmp.ne.s32.totalorder %s25, %s28
      %p37 = scmp.eq.s32.totalorder %s20, 1
      %p38 = por %p36, %p37
      %p39 = scmp.ne.s32.totalorder %s28, %s29
      %p40 = scmp.eq.s32.totalorder %s20, 0
      %p41 = por %p39, %p40
      %p42 = scmp.ne.s32.totalorder %s28, %s29
      %p43 = scmp.eq.s32.totalorder %s21, 1
      %p44 = por %p42, %p43
      %p46 = scmp.ne.s32.totalorder %s29, %s45
      %p47 = scmp.eq.s32.totalorder %s21, 0
      %p48 = por %p46, %p47
      %s50 = sadd.s32 %s49, 1
      %p53 = scmp.eq.s32.totalorder %s15, 1
      %p54 = scmp.ne.s32.totalorder %s49, %s51
      %p55 = scmp.eq.s32.totalorder %s15, 0
      %p56 = por %p54, %p55
      %p57 = scmp.ne.s32.totalorder %s49, %s51
      %p58 = scmp.eq.s32.totalorder %s20, 1
      %p59 = por %p57, %p58
      %p60 = scmp.ne.s32.totalorder %s51, %s52
      %p61 = scmp.eq.s32.totalorder %s20, 0
      %p62 = por %p60, %p61
      %p63 = scmp.ne.s32.totalorder %s51, %s52
      %p64 = scmp.eq.s32.totalorder %s21, 1
      %p65 = por %p63, %p64
      %p67 = scmp.ne.s32.totalorder %s52, %s66
      %p68 = scmp.eq.s32.totalorder %s21, 0
      %p69 = por %p67, %p68
      %s71 = sadd.s32 %s70, 1
      %p74 = scmp.eq.s32.totalorder %s15, 1
      %p75 = scmp.ne.s32.totalorder %s70, %s72
      %p76 = scmp.eq.s32.totalorder %s15, 0
      %p77 = por %p75, %p76
      %p78 = scmp.ne.s32.totalorder %s70, %s72
      %p79 = scmp.eq.s32.totalorder %s20, 1
      %p80 = por %p78, %p79
      %p81 = scmp.ne.s32.totalorder %s72, %s73
      %p82 = scmp.eq.s32.totalorder %s20, 0
      %p83 = por %p81, %p82
      %p84 = scmp.ne.s32.totalorder %s72, %s73
      %p85 = scmp.eq.s32.totalorder %s21, 1
      %p86 = por %p84, %p85
      %p88 = scmp.ne.s32.totalorder %s73, %s87
      %p89 = scmp.eq.s32.totalorder %s21, 0
      %p90 = por %p88, %p89
      %s92 = sadd.s32 %s91, 1
      %p95 = scmp.eq.s32.totalorder %s15, 1
      %p96 = scmp.ne.s32.totalorder %s91, %s93
      %p97 = scmp.eq.s32.totalorder %s15, 0
      %p98 = por %p96, %p97
      %p99 = scmp.ne.s32.totalorder %s91, %s93
      %p100 = scmp.eq.s32.totalorder %s20, 1
      %p101 = por %p99, %p100
      %p102 = scmp.ne.s32.totalorder %s93, %s94
      %p103 = scmp.eq.s32.totalorder %s20, 0
      %p104 = por %p102, %p103
      %p105 = scmp.ne.s32.totalorder %s93, %s94
      %p106 = scmp.eq.s32.totalorder %s21, 1
      %p107 = por %p105, %p106
      %p109 = scmp.ne.s32.totalorder %s94, %s108
      %p110 = scmp.eq.s32.totalorder %s21, 0
      %p111 = por %p109, %p110
      %s113 = sadd.s32 %s112, 1
      %p116 = scmp.eq.s32.totalorder %s15, 1
      %p117 = scmp.ne.s32.totalorder %s112, %s114
      %p118 = scmp.eq.s32.totalorder %s15, 0
      %p119 = por %p117, %p118
      %p120 = scmp.ne.s32.totalorder %s112, %s114
      %p121 = scmp.eq.s32.totalorder %s20, 1
      %p122 = por %p120, %p121
      %p123 = scmp.ne.s32.totalorder %s114, %s115
      %p124 = scmp.eq.s32.totalorder %s20, 0
      %p125 = por %p123, %p124
      %p126 = scmp.ne.s32.totalorder %s114, %s115
      %p127 = scmp.eq.s32.totalorder %s21, 1
      %p128 = por %p126, %p127
      %p130 = scmp.ne.s32.totalorder %s115, %s129
      %p131 = scmp.eq.s32.totalorder %s21, 0
      %p132 = por %p130, %p131
      %s134 = sadd.s32 %s133, 1
      %p137 = scmp.eq.s32.totalorder %s15, 1
      %p138 = scmp.ne.s32.totalorder %s133, %s135
      %p139 = scmp.eq.s32.totalorder %s15, 0
      %p140 = por %p138, %p139
      %p141 = scmp.ne.s32.totalorder %s133, %s135
      %p142 = scmp.eq.s32.totalorder %s20, 1
      %p143 = por %p141, %p142
      %p144 = scmp.ne.s32.totalorder %s135, %s136
      %p145 = scmp.eq.s32.totalorder %s20, 0
      %p146 = por %p144, %p145
      %p147 = scmp.ne.s32.totalorder %s135, %s136
      %p148 = scmp.eq.s32.totalorder %s21, 1
      %p149 = por %p147, %p148
      %p151 = scmp.ne.s32.totalorder %s136, %s150
      %p152 = scmp.eq.s32.totalorder %s21, 0
      %p153 = por %p151, %p152
      %s154 = ssub.s32 %s15, %s22
      %p155 = scmp.eq.s32.totalorder %s154, 0
      %s157 = sadd.s32 %s156, 1
      %s158 = scalar_select %p155, %s156, %s157
      %p161 = pneg %p155
      %p162 = scmp.eq.s32.totalorder %s15, 1
      %p163 = por %p161, %p162
      %p164 = scmp.ne.s32.totalorder %s156, %s159
      %p165 = scmp.eq.s32.totalorder %s15, 0
      %p166 = por %p164, %p165
      %p167 = scmp.ne.s32.totalorder %s156, %s159
      %p168 = scmp.eq.s32.totalorder %s20, 1
      %p169 = por %p167, %p168
      %p170 = scmp.ne.s32.totalorder %s159, %s160
      %p171 = scmp.eq.s32.totalorder %s20, 0
      %p172 = por %p170, %p171
      %p173 = scmp.ne.s32.totalorder %s159, %s160
      %p174 = scmp.eq.s32.totalorder %s21, 1
      %p175 = por %p173, %p174
      %p177 = scmp.ne.s32.totalorder %s160, %s176
      %p178 = scmp.eq.s32.totalorder %s21, 0
      %p179 = por %p177, %p178
      %p180 = scmp.le.s32.totalorder 1, %s15
      %p181 = scmp.lt.s32.totalorder %s15, 3
      %p182 = pnand %p180, %p181
      %p183 = pneg %p182
      // Predicated region
      $region9: #{tpu_custom_call.1} parent=5 // pred_check
        _
      $region10: #{tpu_custom_call.1} parent=5 // pred_check_branch
        %185 = sbr.rel (%p182) target = $region12
      $region11: #{tpu_custom_call.1} parent=5 // pred_region
        %s186 = ssub.s32 %s15, 1
        // Predicated region
        $region13: #{tpu_custom_call.1} parent=11 // pred_check
          %p187 = pneg %p62
        $region14: #{tpu_custom_call.1} parent=11 // pred_check_branch
          %189 = sbr.rel (%p187) target = $region16
        $region15: #{tpu_custom_call.1} parent=11 // pred_region
          _
        $region16: #{tpu_custom_call.1} parent=11 // pred_fallthru
          _
        // Predicated region
        $region17: #{tpu_custom_call.1} parent=11 // pred_check
          %p190 = pneg %p83
        $region18: #{tpu_custom_call.1} parent=11 // pred_check_branch
          %192 = sbr.rel (%p190) target = $region20
        $region19: #{tpu_custom_call.1} parent=11 // pred_region
          _
        $region20: #{tpu_custom_call.1} parent=11 // pred_fallthru
          _
        // Predicated region
        $region21: #{tpu_custom_call.1} parent=11 // pred_check
          %p193 = pneg %p104
        $region22: #{tpu_custom_call.1} parent=11 // pred_check_branch
          %195 = sbr.rel (%p193) target = $region24
        $region23: #{tpu_custom_call.1} parent=11 // pred_region
          _
        $region24: #{tpu_custom_call.1} parent=11 // pred_fallthru
          _
        // Predicated region
        $region25: #{tpu_custom_call.1} parent=11 // pred_check
          %p196 = pneg %p125
        $region26: #{tpu_custom_call.1} parent=11 // pred_check_branch
          %198 = sbr.rel (%p196) target = $region28
        $region27: #{tpu_custom_call.1} parent=11 // pred_region
          _
        $region28: #{tpu_custom_call.1} parent=11 // pred_fallthru
          _
        // Predicated region
        $region29: #{tpu_custom_call.1} parent=11 // pred_check
          %p199 = pneg %p146
        $region30: #{tpu_custom_call.1} parent=11 // pred_check_branch
          %201 = sbr.rel (%p199) target = $region32
        $region31: #{tpu_custom_call.1} parent=11 // pred_region
          _
        $region32: #{tpu_custom_call.1} parent=11 // pred_fallthru
          _
      $region12: #{tpu_custom_call.1} parent=5 // pred_fallthru
        _
      %p202 = scmp.lt.s32.totalorder %s15, 2
      // Predicated region
      $region33: #{tpu_custom_call.1} parent=5 // pred_check
        %p203 = pneg %p202
      $region34: #{tpu_custom_call.1} parent=5 // pred_check_branch
        %205 = sbr.rel (%p203) target = $region36
      $region35: #{tpu_custom_call.1} parent=5 // pred_region
        // Predicated region
        $region37: #{tpu_custom_call.1} parent=35 // pred_check
          %p206 = pneg %p35
        $region38: #{tpu_custom_call.1} parent=35 // pred_check_branch
          %208 = sbr.rel (%p206) target = $region40
        $region39: #{tpu_custom_call.1} parent=35 // pred_region
          %s209 = smul.u32 8, %s15
          %p210 = scmp.lt.s32.totalorder %s209, 15
          %s211 = scalar_select %p210, %s209, 15
          %s212 = smul.addr %s211, 3
          %s213 = smul.addr %s212, 4
          %s214 = scalar_lea.vmem %s0, %s213
          %s215 = smul.u32 8, %s15
        $region40: #{tpu_custom_call.1} parent=35 // pred_fallthru
          _
      $region36: #{tpu_custom_call.1} parent=5 // pred_fallthru
        _
      %p216 = scmp.le.s32.totalorder 1, %s15
      %p217 = scmp.lt.s32.totalorder %s15, 3
      %p218 = pnand %p216, %p217
      %p219 = pneg %p218
      // Predicated region
      $region41: #{tpu_custom_call.1} parent=5 // pred_check
        _
      $region42: #{tpu_custom_call.1} parent=5 // pred_check_branch
        %221 = sbr.rel (%p218) target = $region44
      $region43: #{tpu_custom_call.1} parent=5 // pred_region
        %s222 = ssub.s32 %s15, 1
        %s223 = smul.u32 8, %s20
        %p224 = scmp.lt.s32.totalorder %s223, 15
        %s225 = scalar_select %p224, %s223, 15
        %s226 = smul.addr %s225, 3
        %s227 = smul.addr %s226, 4
        %s228 = scalar_lea.vmem %s0, %s227
        %p229 = pneg %p41
        %p230 = pneg %p38
        %p231 = pneg %p62
        %p232 = pneg %p59
        %p233 = pneg %p83
        %p234 = pneg %p80
        %p235 = pneg %p104
        %p236 = pneg %p101
        %p237 = pneg %p125
        %p238 = pneg %p122
        %p239 = pneg %p146
        %p240 = pneg %p143
        %p241 = pneg %p172
        %p242 = pneg %p169
        %s243 = sand.u32 %s159, 1
        %s244 = scalar_lea.sflag [#allocation3], %s243
        %s245 = sand.u32 %s159, 1
        %s246 = smul.addr %s245, 8
        %s247 = scalar_lea.vmem [#allocation2], %s246
        %s248 = smul.u32 8, %s20
        %p249 = scmp.lt.s32.totalorder %s248, 15
        %s250 = scalar_select %p249, %s248, 15
        %s251 = smul.addr %s250, 3
        %s252 = smul.addr %s251, 4
        %s253 = scalar_lea.vmem %s0, %s252
        %s254 = smul.u32 8, %s20
        %v256 = vld [vmem:[%s1] sm:$0xf]
        %v257 = vld [vmem:[%s1 + $0x4] sm:$0xf]
        %v258 = vld [vmem:[%s1 + $0x8] sm:$0xf]
        %v259 = vld [vmem:[%s1 + $0xc] sm:$0xf]
        %v260 = vld [vmem:[%s1 + $0x10] sm:$0xf]
        %v261 = vld [vmem:[%s1 + $0x14] sm:$0xf]
        %v262 = vld [vmem:[%s1 + $0x18] sm:$0xf]
        %v263 = vld [vmem:[%s1 + $0x1c] sm:$0xf]
        %v264 = vld [vmem:[%s1 + $0x20] sm:$0xf]
        %v265 = vld [vmem:[%s1 + $0x24] sm:$0xf]
        %v266 = vld [vmem:[%s1 + $0x28] sm:$0xf]
        %v267 = vld [vmem:[%s1 + $0x2c] sm:$0xf]
        %v268 = vld [vmem:[%s1 + $0x30] sm:$0xf]
        %v269 = vld [vmem:[%s1 + $0x34] sm:$0xf]
        %v270 = vld [vmem:[%s1 + $0x38] sm:$0xf]
        %v271 = vld [vmem:[%s1 + $0x3c] sm:$0xf]
        %v272 = vld [vmem:[%s1 + $0x40] sm:$0xf]
        %v273 = vld [vmem:[%s1 + $0x44] sm:$0xf]
        %v274 = vld [vmem:[%s1 + $0x48] sm:$0xf]
        %v275 = vld [vmem:[%s1 + $0x4c] sm:$0xf]
        %v276 = vld [vmem:[%s2] sm:$0x1]
        %v277 = vld [vmem:[%s3] sm:$0x1]
        %v278 = vld [vmem:[%s253] sm:$0xf]
        %v279 = vld [vmem:[%s253 + $0xc] sm:$0xf]
        %v280 = vld [vmem:[%s253 + $0x18] sm:$0xf]
        %v281 = vld [vmem:[%s253 + $0x24] sm:$0xf]
        %v282 = vld [vmem:[%s253 + $0x30] sm:$0xf]
        %v283 = vld [vmem:[%s253 + $0x3c] sm:$0xf]
        %v284 = vld [vmem:[%s253 + $0x48] sm:$0xf]
        %v285 = vld [vmem:[%s253 + $0x54] sm:$0xf]
        %v286 = vld [vmem:[%s253 + $0x4] sm:$0x1]
        %v287 = vld [vmem:[%s253 + $0x10] sm:$0x1]
        %v288 = vld [vmem:[%s253 + $0x1c] sm:$0x1]
        %v289 = vld [vmem:[%s253 + $0x28] sm:$0x1]
        %v290 = vld [vmem:[%s253 + $0x34] sm:$0x1]
        %v291 = vld [vmem:[%s253 + $0x40] sm:$0x1]
        %v292 = vld [vmem:[%s253 + $0x4c] sm:$0x1]
        %v293 = vld [vmem:[%s253 + $0x58] sm:$0x1]
        %v294 = vld [vmem:[%s253] sm:$0xe]
        %v295 = vld [vmem:[%s253 + $0xc] sm:$0xe]
        %v296 = vld [vmem:[%s253 + $0x18] sm:$0xe]
        %v297 = vld [vmem:[%s253 + $0x24] sm:$0xe]
        %v298 = vld [vmem:[%s253 + $0x30] sm:$0xe]
        %v299 = vld [vmem:[%s253 + $0x3c] sm:$0xe]
        %v300 = vld [vmem:[%s253 + $0x48] sm:$0xe]
        %v301 = vld [vmem:[%s253 + $0x54] sm:$0xe]
        %v302 = vld [vmem:[%s253 + $0x4] sm:$0x3]
        %v303 = vld [vmem:[%s253 + $0x10] sm:$0x3]
        %v304 = vld [vmem:[%s253 + $0x1c] sm:$0x3]
        %v305 = vld [vmem:[%s253 + $0x28] sm:$0x3]
        %v306 = vld [vmem:[%s253 + $0x34] sm:$0x3]
        %v307 = vld [vmem:[%s253 + $0x40] sm:$0x3]
        %v308 = vld [vmem:[%s253 + $0x4c] sm:$0x3]
        %v309 = vld [vmem:[%s253 + $0x58] sm:$0x3]
        %v310 = vld [vmem:[%s253] sm:$0xc]
        %v311 = vld [vmem:[%s253 + $0xc] sm:$0xc]
        %v312 = vld [vmem:[%s253 + $0x18] sm:$0xc]
        %v313 = vld [vmem:[%s253 + $0x24] sm:$0xc]
        %v314 = vld [vmem:[%s253 + $0x30] sm:$0xc]
        %v315 = vld [vmem:[%s253 + $0x3c] sm:$0xc]
        %v316 = vld [vmem:[%s253 + $0x48] sm:$0xc]
        %v317 = vld [vmem:[%s253 + $0x54] sm:$0xc]
        %v334 = vunpack.c.l.b16 %v278
        %v335 = vunpack.c.l.b16 %v286
        %v336 = vunpack.c.l.b16 %v279
        %v337 = vunpack.c.l.b16 %v287
        %v338 = vunpack.c.l.b16 %v280
        %v339 = vunpack.c.l.b16 %v288
        %v340 = vunpack.c.l.b16 %v281
        %v341 = vunpack.c.l.b16 %v289
        %v342 = vunpack.c.l.b16 %v282
        %v343 = vunpack.c.l.b16 %v290
        %v344 = vunpack.c.l.b16 %v283
        %v345 = vunpack.c.l.b16 %v291
        %v346 = vunpack.c.l.b16 %v284
        %v347 = vunpack.c.l.b16 %v292
        %v348 = vunpack.c.l.b16 %v285
        %v349 = vunpack.c.l.b16 %v293
        %v350 = vpack.c.b16 %v335, %v334
        %v351 = vpack.c.b16 %v337, %v336
        %v352 = vpack.c.b16 %v339, %v338
        %v353 = vpack.c.b16 %v341, %v340
        %v354 = vpack.c.b16 %v343, %v342
        %v355 = vpack.c.b16 %v345, %v344
        %v356 = vpack.c.b16 %v347, %v346
        %v357 = vpack.c.b16 %v349, %v348
        %v359 = vshrl.u32 %v350, 16
        %v361 = vshll.u32 %v350, 16
        %v363 = vrot.slane %v361, 1
        %v364 = vor.u32 %v359, %v363
        %v366 = vshrl.u32 %v351, 16
        %v368 = vshll.u32 %v351, 16
        %v370 = vrot.slane %v368, 1
        %v371 = vor.u32 %v366, %v370
        %v373 = vshrl.u32 %v352, 16
        %v375 = vshll.u32 %v352, 16
        %v377 = vrot.slane %v375, 1
        %v378 = vor.u32 %v373, %v377
        %v380 = vshrl.u32 %v353, 16
        %v382 = vshll.u32 %v353, 16
        %v384 = vrot.slane %v382, 1
        %v385 = vor.u32 %v380, %v384
        %v387 = vshrl.u32 %v354, 16
        %v389 = vshll.u32 %v354, 16
        %v391 = vrot.slane %v389, 1
        %v392 = vor.u32 %v387, %v391
        %v394 = vshrl.u32 %v355, 16
        %v396 = vshll.u32 %v355, 16
        %v398 = vrot.slane %v396, 1
        %v399 = vor.u32 %v394, %v398
        %v401 = vshrl.u32 %v356, 16
        %v403 = vshll.u32 %v356, 16
        %v405 = vrot.slane %v403, 1
        %v406 = vor.u32 %v401, %v405
        %v408 = vshrl.u32 %v357, 16
        %v410 = vshll.u32 %v357, 16
        %v412 = vrot.slane %v410, 1
        %v413 = vor.u32 %v408, %v412
        %414 = vrot.lane.b32.xlu0 %v364, 32
        %v415 = vpop.permute.xlu0 %414
        %416 = vrot.lane.b32.xlu0 %v371, 32
        %v417 = vpop.permute.xlu0 %416
        %418 = vrot.lane.b32.xlu0 %v378, 32
        %v419 = vpop.permute.xlu0 %418
        %420 = vrot.lane.b32.xlu0 %v385, 32
        %v421 = vpop.permute.xlu0 %420
        %422 = vrot.lane.b32.xlu0 %v392, 32
        %v423 = vpop.permute.xlu0 %422
        %424 = vrot.lane.b32.xlu0 %v399, 32
        %v425 = vpop.permute.xlu0 %424
        %426 = vrot.lane.b32.xlu0 %v406, 32
        %v427 = vpop.permute.xlu0 %426
        %428 = vrot.lane.b32.xlu0 %v413, 32
        %v429 = vpop.permute.xlu0 %428
        %v438 = vunpack.c.l.b16 %v294
        %v439 = vunpack.c.l.b16 %v295
        %v440 = vunpack.c.l.b16 %v296
        %v441 = vunpack.c.l.b16 %v297
        %v442 = vunpack.c.l.b16 %v298
        %v443 = vunpack.c.l.b16 %v299
        %v444 = vunpack.c.l.b16 %v300
        %v445 = vunpack.c.l.b16 %v301
        %v446 = vpack.c.b16 %v335, %v438
        %v447 = vpack.c.b16 %v337, %v439
        %v448 = vpack.c.b16 %v339, %v440
        %v449 = vpack.c.b16 %v341, %v441
        %v450 = vpack.c.b16 %v343, %v442
        %v451 = vpack.c.b16 %v345, %v443
        %v452 = vpack.c.b16 %v347, %v444
        %v453 = vpack.c.b16 %v349, %v445
        %v454 = vrot.slane %v446, 1
        %v455 = vrot.slane %v447, 1
        %v456 = vrot.slane %v448, 1
        %v457 = vrot.slane %v449, 1
        %v458 = vrot.slane %v450, 1
        %v459 = vrot.slane %v451, 1
        %v460 = vrot.slane %v452, 1
        %v461 = vrot.slane %v453, 1
        %462 = vrot.lane.b32.xlu0 %v454, 64
        %v463 = vpop.permute.xlu0 %462
        %464 = vrot.lane.b32.xlu0 %v455, 64
        %v465 = vpop.permute.xlu0 %464
        %466 = vrot.lane.b32.xlu0 %v456, 64
        %v467 = vpop.permute.xlu0 %466
        %468 = vrot.lane.b32.xlu0 %v457, 64
        %v469 = vpop.permute.xlu0 %468
        %470 = vrot.lane.b32.xlu0 %v458, 64
        %v471 = vpop.permute.xlu0 %470
        %472 = vrot.lane.b32.xlu0 %v459, 64
        %v473 = vpop.permute.xlu0 %472
        %474 = vrot.lane.b32.xlu0 %v460, 64
        %v475 = vpop.permute.xlu0 %474
        %476 = vrot.lane.b32.xlu0 %v461, 64
        %v477 = vpop.permute.xlu0 %476
        %v486 = vunpack.c.l.b16 %v302
        %v487 = vunpack.c.l.b16 %v303
        %v488 = vunpack.c.l.b16 %v304
        %v489 = vunpack.c.l.b16 %v305
        %v490 = vunpack.c.l.b16 %v306
        %v491 = vunpack.c.l.b16 %v307
        %v492 = vunpack.c.l.b16 %v308
        %v493 = vunpack.c.l.b16 %v309
        %v494 = vpack.c.b16 %v486, %v438
        %v495 = vpack.c.b16 %v487, %v439
        %v496 = vpack.c.b16 %v488, %v440
        %v497 = vpack.c.b16 %v489, %v441
        %v498 = vpack.c.b16 %v490, %v442
        %v499 = vpack.c.b16 %v491, %v443
        %v500 = vpack.c.b16 %v492, %v444
        %v501 = vpack.c.b16 %v493, %v445
        %v503 = vshrl.u32 %v494, 16
        %v505 = vrot.slane %v503, 1
        %v506 = vshll.u32 %v494, 16
        %v508 = vrot.slane %v506, 2
        %v509 = vor.u32 %v505, %v508
        %v511 = vshrl.u32 %v495, 16
        %v513 = vrot.slane %v511, 1
        %v514 = vshll.u32 %v495, 16
        %v516 = vrot.slane %v514, 2
        %v517 = vor.u32 %v513, %v516
        %v519 = vshrl.u32 %v496, 16
        %v521 = vrot.slane %v519, 1
        %v522 = vshll.u32 %v496, 16
        %v524 = vrot.slane %v522, 2
        %v525 = vor.u32 %v521, %v524
        %v527 = vshrl.u32 %v497, 16
        %v529 = vrot.slane %v527, 1
        %v530 = vshll.u32 %v497, 16
        %v532 = vrot.slane %v530, 2
        %v533 = vor.u32 %v529, %v532
        %v535 = vshrl.u32 %v498, 16
        %v537 = vrot.slane %v535, 1
        %v538 = vshll.u32 %v498, 16
        %v540 = vrot.slane %v538, 2
        %v541 = vor.u32 %v537, %v540
        %v543 = vshrl.u32 %v499, 16
        %v545 = vrot.slane %v543, 1
        %v546 = vshll.u32 %v499, 16
        %v548 = vrot.slane %v546, 2
        %v549 = vor.u32 %v545, %v548
        %v551 = vshrl.u32 %v500, 16
        %v553 = vrot.slane %v551, 1
        %v554 = vshll.u32 %v500, 16
        %v556 = vrot.slane %v554, 2
        %v557 = vor.u32 %v553, %v556
        %v559 = vshrl.u32 %v501, 16
        %v561 = vrot.slane %v559, 1
        %v562 = vshll.u32 %v501, 16
        %v564 = vrot.slane %v562, 2
        %v565 = vor.u32 %v561, %v564
        %566 = vrot.lane.b32.xlu0 %v509, 96
        %v567 = vpop.permute.xlu0 %566
        %568 = vrot.lane.b32.xlu0 %v517, 96
        %v569 = vpop.permute.xlu0 %568
        %570 = vrot.lane.b32.xlu0 %v525, 96
        %v571 = vpop.permute.xlu0 %570
        %572 = vrot.lane.b32.xlu0 %v533, 96
        %v573 = vpop.permute.xlu0 %572
        %574 = vrot.lane.b32.xlu0 %v541, 96
        %v575 = vpop.permute.xlu0 %574
        %576 = vrot.lane.b32.xlu0 %v549, 96
        %v577 = vpop.permute.xlu0 %576
        %578 = vrot.lane.b32.xlu0 %v557, 96
        %v579 = vpop.permute.xlu0 %578
        %580 = vrot.lane.b32.xlu0 %v565, 96
        %v581 = vpop.permute.xlu0 %580
        %v590 = vunpack.c.l.b16 %v310
        %v591 = vunpack.c.l.b16 %v311
        %v592 = vunpack.c.l.b16 %v312
        %v593 = vunpack.c.l.b16 %v313
        %v594 = vunpack.c.l.b16 %v314
        %v595 = vunpack.c.l.b16 %v315
        %v596 = vunpack.c.l.b16 %v316
        %v597 = vunpack.c.l.b16 %v317
        %v598 = vpack.c.b16 %v486, %v590
        %v599 = vpack.c.b16 %v487, %v591
        %v600 = vpack.c.b16 %v488, %v592
        %v601 = vpack.c.b16 %v489, %v593
        %v602 = vpack.c.b16 %v490, %v594
        %v603 = vpack.c.b16 %v491, %v595
        %v604 = vpack.c.b16 %v492, %v596
        %v605 = vpack.c.b16 %v493, %v597
        %v606 = vrot.slane %v598, 2
        %v607 = vrot.slane %v599, 2
        %v608 = vrot.slane %v600, 2
        %v609 = vrot.slane %v601, 2
        %v610 = vrot.slane %v602, 2
        %v611 = vrot.slane %v603, 2
        %v612 = vrot.slane %v604, 2
        %v613 = vrot.slane %v605, 2
        %vm614 = vcmask 261120
        %v617 = vsel %vm614, %v278, %v415
        %v620 = vsel %vm614, %v279, %v417
        %v623 = vsel %vm614, %v280, %v419
        %v626 = vsel %vm614, %v281, %v421
        %v629 = vsel %vm614, %v282, %v423
        %v632 = vsel %vm614, %v283, %v425
        %v635 = vsel %vm614, %v284, %v427
        %v638 = vsel %vm614, %v285, %v429
        %vm639 = vcmask 523264
        %v641 = vsel %vm639, %v617, %v463
        %v643 = vsel %vm639, %v620, %v465
        %v645 = vsel %vm639, %v623, %v467
        %v647 = vsel %vm639, %v626, %v469
        %v649 = vsel %vm639, %v629, %v471
        %v651 = vsel %vm639, %v632, %v473
        %v653 = vsel %vm639, %v635, %v475
        %v655 = vsel %vm639, %v638, %v477
        %vm656 = vcmask 785408
        %v658 = vsel %vm656, %v641, %v567
        %v660 = vsel %vm656, %v643, %v569
        %v662 = vsel %vm656, %v645, %v571
        %v664 = vsel %vm656, %v647, %v573
        %v666 = vsel %vm656, %v649, %v575
        %v668 = vsel %vm656, %v651, %v577
        %v670 = vsel %vm656, %v653, %v579
        %v672 = vsel %vm656, %v655, %v581
        %v674 = vlaneseq
        %v675 = vshrl.u32 %v674, 7
        %v676 = vsub.s32 0, %v675
        %v677 = vrot.slane %v276, %v676
        %v687 = vunpack.c.l.b16 %v658
        %v688 = vunpack.c.l.b16 %v606
        %v689 = vunpack.c.l.b16 %v660
        %v690 = vunpack.c.l.b16 %v607
        %v691 = vunpack.c.l.b16 %v662
        %v692 = vunpack.c.l.b16 %v608
        %v693 = vunpack.c.l.b16 %v664
        %v694 = vunpack.c.l.b16 %v609
        %v695 = vunpack.c.l.b16 %v666
        %v696 = vunpack.c.l.b16 %v610
        %v697 = vunpack.c.l.b16 %v668
        %v698 = vunpack.c.l.b16 %v611
        %v699 = vunpack.c.l.b16 %v670
        %v700 = vunpack.c.l.b16 %v612
        %v701 = vunpack.c.l.b16 %v672
        %v702 = vunpack.c.l.b16 %v613
        %v703 = vpack.c.b16 %v689, %v687
        %v704 = vpack.c.b16 %v690, %v688
        %v705 = vpack.c.b16 %v693, %v691
        %v706 = vpack.c.b16 %v694, %v692
        %v707 = vpack.c.b16 %v697, %v695
        %v708 = vpack.c.b16 %v698, %v696
        %v709 = vpack.c.b16 %v701, %v699
        %v710 = vpack.c.b16 %v702, %v700
        %v735 = vunpack.c.l.b16 %v256
        %v736 = vunpack.c.l.b16 %v257
        %v737 = vunpack.c.l.b16 %v258
        %v738 = vunpack.c.l.b16 %v259
        %v739 = vunpack.c.l.b16 %v260
        %v740 = vunpack.c.l.b16 %v261
        %v741 = vunpack.c.l.b16 %v262
        %v742 = vunpack.c.l.b16 %v263
        %v743 = vunpack.c.l.b16 %v264
        %v744 = vunpack.c.l.b16 %v265
        %v745 = vunpack.c.l.b16 %v266
        %v746 = vunpack.c.l.b16 %v267
        %v747 = vunpack.c.l.b16 %v268
        %v748 = vunpack.c.l.b16 %v269
        %v749 = vunpack.c.l.b16 %v270
        %v750 = vunpack.c.l.b16 %v271
        %v751 = vunpack.c.l.b16 %v272
        %v752 = vunpack.c.l.b16 %v273
        %v753 = vunpack.c.l.b16 %v274
        %v754 = vunpack.c.l.b16 %v275
        %v755 = vpack.c.b16 %v736, %v735
        %v756 = vpack.c.b16 %v738, %v737
        %v757 = vpack.c.b16 %v740, %v739
        %v758 = vpack.c.b16 %v742, %v741
        %v759 = vpack.c.b16 %v744, %v743
        %v760 = vpack.c.b16 %v746, %v745
        %v761 = vpack.c.b16 %v748, %v747
        %v762 = vpack.c.b16 %v750, %v749
        %v763 = vpack.c.b16 %v752, %v751
        %v764 = vpack.c.b16 %v754, %v753
        %v776 = vsel %vm614, %v704, 0
        %v779 = vsel %vm614, %v706, 0
        %v782 = vsel %vm614, %v708, 0
        %v785 = vsel %vm614, %v710, 0
        %787 = vmatprep.subr.bf16.mxu0 0
        %788 = vmatpush1.bf16.msra.mxu0 %v755
        %789 = vmatprep.subr.bf16.mxu0 0
        %790 = vmatpush1.bf16.msra.mxu0 %v756
        %791 = vmatprep.subr.bf16.mxu0 0
        %792 = vmatpush1.bf16.msra.mxu0 %v757
        %793 = vmatprep.subr.bf16.mxu0 0
        %794 = vmatpush1.bf16.msra.mxu0 %v758
        %795 = vmatprep.subr.bf16.mxu0 0
        %796 = vmatpush1.bf16.msra.mxu0 %v759
        %797 = vmatprep.subr.bf16.mxu0 0
        %798 = vmatpush1.bf16.msra.mxu0 %v760
        %799 = vmatprep.subr.bf16.mxu0 0
        %800 = vmatpush1.bf16.msra.mxu0 %v761
        %801 = vmatprep.subr.bf16.mxu0 0
        %802 = vmatpush1.bf16.msra.mxu0 %v762
        %803 = vmatprep.subr.bf16.mxu0 0
        %804 = vmatpush1.bf16.msra.mxu0 %v763
        %805 = vmatprep.subr.bf16.mxu0 0
        %806 = vmatpush1.bf16.msra.mxu0 %v764
        %807 = vmatprep.subr.bf16.mxu0 0
        %808 = vmatpush1.bf16.msra.mxu0 0
        %809 = vmatprep.subr.bf16.mxu0 0
        %810 = vmatpush1.bf16.msra.mxu0 0
        %811 = vmatprep.subr.bf16.mxu0 0
        %812 = vmatpush1.bf16.msra.mxu0 0
        %813 = vmatprep.subr.bf16.mxu0 0
        %814 = vmatpush1.bf16.msra.mxu0 0
        %815 = vmatprep.subr.bf16.mxu0 0
        %816 = vmatpush1.bf16.msra.mxu0 0
        %817 = vmatprep.subr.bf16.mxu0 0
        %818 = vmatpush1.bf16.msra.mxu0 0
        %819 = vmatprep.mubr.bf16.mxu0 %v776
        %820 = vmatmul.mubr.bf16.gmra.mrb[0].mxu0 %v703
        %v821 = vpop.f32.mrb[0].mxu0
        %v822 = vadd.f32 %v677, %v821
        %v823 = vpop.f32.mrb[0].mxu0
        %v824 = vpop.f32.mrb[0].mxu0
        %v825 = vadd.f32 %v677, %v824
        %v826 = vpop.f32.mrb[0].mxu0
        %827 = vmatprep.mubr.bf16.mxu0 %v779
        %828 = vmatmul.mubr.bf16.gmra.mrb[0].mxu0 %v705
        %v829 = vpop.f32.mrb[0].mxu0
        %v830 = vadd.f32 %v677, %v829
        %v831 = vpop.f32.mrb[0].mxu0
        %v832 = vpop.f32.mrb[0].mxu0
        %v833 = vadd.f32 %v677, %v832
        %v834 = vpop.f32.mrb[0].mxu0
        %835 = vmatprep.mubr.bf16.mxu0 %v782
        %836 = vmatmul.mubr.bf16.gmra.mrb[0].mxu0 %v707
        %v837 = vpop.f32.mrb[0].mxu0
        %v838 = vadd.f32 %v677, %v837
        %v839 = vpop.f32.mrb[0].mxu0
        %v840 = vpop.f32.mrb[0].mxu0
        %v841 = vadd.f32 %v677, %v840
        %v842 = vpop.f32.mrb[0].mxu0
        %843 = vmatprep.mubr.bf16.mxu0 %v785
        %844 = vmatmul.mubr.bf16.gmra.mrb[0].mxu0 %v709
        %v845 = vpop.f32.mrb[0].mxu0
        %v846 = vadd.f32 %v677, %v845
        %v847 = vpop.f32.mrb[0].mxu0
        %v848 = vpop.f32.mrb[0].mxu0
        %v849 = vadd.f32 %v677, %v848
        %v850 = vpop.f32.mrb[0].mxu0
        %851 = vdwg.mxu0
        %v852 = vmax.f32 %v822, 0.0
        %v853 = vmax.f32 %v825, 0.0
        %v854 = vmax.f32 %v830, 0.0
        %v855 = vmax.f32 %v833, 0.0
        %v856 = vmax.f32 %v838, 0.0
        %v857 = vmax.f32 %v841, 0.0
        %v858 = vmax.f32 %v846, 0.0
        %v859 = vmax.f32 %v849, 0.0
        %v860 = vrot.slane %v852, 4
        %v861 = vmax.f32 %v852, %v860
        %v862 = vrot.slane %v861, 2
        %v863 = vmax.f32 %v861, %v862
        %v864 = vrot.slane %v863, 1
        %v865 = vmax.f32 %v863, %v864
        %v866 = vrot.slane %v853, 4
        %v867 = vmax.f32 %v853, %v866
        %v868 = vrot.slane %v867, 2
        %v869 = vmax.f32 %v867, %v868
        %v870 = vrot.slane %v869, 1
        %v871 = vmax.f32 %v869, %v870
        %v872 = vrot.slane %v854, 4
        %v873 = vmax.f32 %v854, %v872
        %v874 = vrot.slane %v873, 2
        %v875 = vmax.f32 %v873, %v874
        %v876 = vrot.slane %v875, 1
        %v877 = vmax.f32 %v875, %v876
        %v878 = vrot.slane %v855, 4
        %v879 = vmax.f32 %v855, %v878
        %v880 = vrot.slane %v879, 2
        %v881 = vmax.f32 %v879, %v880
        %v882 = vrot.slane %v881, 1
        %v883 = vmax.f32 %v881, %v882
        %v884 = vrot.slane %v856, 4
        %v885 = vmax.f32 %v856, %v884
        %v886 = vrot.slane %v885, 2
        %v887 = vmax.f32 %v885, %v886
        %v888 = vrot.slane %v887, 1
        %v889 = vmax.f32 %v887, %v888
        %v890 = vrot.slane %v857, 4
        %v891 = vmax.f32 %v857, %v890
        %v892 = vrot.slane %v891, 2
        %v893 = vmax.f32 %v891, %v892
        %v894 = vrot.slane %v893, 1
        %v895 = vmax.f32 %v893, %v894
        %v896 = vrot.slane %v858, 4
        %v897 = vmax.f32 %v858, %v896
        %v898 = vrot.slane %v897, 2
        %v899 = vmax.f32 %v897, %v898
        %v900 = vrot.slane %v899, 1
        %v901 = vmax.f32 %v899, %v900
        %v902 = vrot.slane %v859, 4
        %v903 = vmax.f32 %v859, %v902
        %v904 = vrot.slane %v903, 2
        %v905 = vmax.f32 %v903, %v904
        %v906 = vrot.slane %v905, 1
        %v907 = vmax.f32 %v905, %v906
        %v908 = vld [vmem:[%s253 + $0x4] sm:$0xf]
        %v909 = vld [vmem:[%s253 + $0x10] sm:$0xf]
        %v910 = vld [vmem:[%s253 + $0x1c] sm:$0xf]
        %v911 = vld [vmem:[%s253 + $0x28] sm:$0xf]
        %v912 = vld [vmem:[%s253 + $0x34] sm:$0xf]
        %v913 = vld [vmem:[%s253 + $0x40] sm:$0xf]
        %v914 = vld [vmem:[%s253 + $0x4c] sm:$0xf]
        %v915 = vld [vmem:[%s253 + $0x58] sm:$0xf]
        %v916 = vld [vmem:[%s253 + $0x8] sm:$0x1]
        %v917 = vld [vmem:[%s253 + $0x14] sm:$0x1]
        %v918 = vld [vmem:[%s253 + $0x20] sm:$0x1]
        %v919 = vld [vmem:[%s253 + $0x2c] sm:$0x1]
        %v920 = vld [vmem:[%s253 + $0x38] sm:$0x1]
        %v921 = vld [vmem:[%s253 + $0x44] sm:$0x1]
        %v922 = vld [vmem:[%s253 + $0x50] sm:$0x1]
        %v923 = vld [vmem:[%s253 + $0x5c] sm:$0x1]
        %v924 = vld [vmem:[%s253 + $0x4] sm:$0xe]
        %v925 = vld [vmem:[%s253 + $0x10] sm:$0xe]
        %v926 = vld [vmem:[%s253 + $0x1c] sm:$0xe]
        %v927 = vld [vmem:[%s253 + $0x28] sm:$0xe]
        %v928 = vld [vmem:[%s253 + $0x34] sm:$0xe]
        %v929 = vld [vmem:[%s253 + $0x40] sm:$0xe]
        %v930 = vld [vmem:[%s253 + $0x4c] sm:$0xe]
        %v931 = vld [vmem:[%s253 + $0x58] sm:$0xe]
        %v932 = vld [vmem:[%s253 + $0x8] sm:$0x3]
        %v933 = vld [vmem:[%s253 + $0x14] sm:$0x3]
        %v934 = vld [vmem:[%s253 + $0x20] sm:$0x3]
        %v935 = vld [vmem:[%s253 + $0x2c] sm:$0x3]
        %v936 = vld [vmem:[%s253 + $0x38] sm:$0x3]
        %v937 = vld [vmem:[%s253 + $0x44] sm:$0x3]
        %v938 = vld [vmem:[%s253 + $0x50] sm:$0x3]
        %v939 = vld [vmem:[%s253 + $0x5c] sm:$0x3]
        %v940 = vld [vmem:[%s253 + $0x4] sm:$0xc]
        %v941 = vld [vmem:[%s253 + $0x10] sm:$0xc]
        %v942 = vld [vmem:[%s253 + $0x1c] sm:$0xc]
        %v943 = vld [vmem:[%s253 + $0x28] sm:$0xc]
        %v944 = vld [vmem:[%s253 + $0x34] sm:$0xc]
        %v945 = vld [vmem:[%s253 + $0x40] sm:$0xc]
        %v946 = vld [vmem:[%s253 + $0x4c] sm:$0xc]
        %v947 = vld [vmem:[%s253 + $0x58] sm:$0xc]
        %v964 = vunpack.c.l.b16 %v908
        %v965 = vunpack.c.l.b16 %v916
        %v966 = vunpack.c.l.b16 %v909
        %v967 = vunpack.c.l.b16 %v917
        %v968 = vunpack.c.l.b16 %v910
        %v969 = vunpack.c.l.b16 %v918
        %v970 = vunpack.c.l.b16 %v911
        %v971 = vunpack.c.l.b16 %v919
        %v972 = vunpack.c.l.b16 %v912
        %v973 = vunpack.c.l.b16 %v920
        %v974 = vunpack.c.l.b16 %v913
        %v975 = vunpack.c.l.b16 %v921
        %v976 = vunpack.c.l.b16 %v914
        %v977 = vunpack.c.l.b16 %v922
        %v978 = vunpack.c.l.b16 %v915
        %v979 = vunpack.c.l.b16 %v923
        %v980 = vpack.c.b16 %v965, %v964
        %v981 = vpack.c.b16 %v967, %v966
        %v982 = vpack.c.b16 %v969, %v968
        %v983 = vpack.c.b16 %v971, %v970
        %v984 = vpack.c.b16 %v973, %v972
        %v985 = vpack.c.b16 %v975, %v974
        %v986 = vpack.c.b16 %v977, %v976
        %v987 = vpack.c.b16 %v979, %v978
        %v989 = vshrl.u32 %v980, 16
        %v991 = vshll.u32 %v980, 16
        %v993 = vrot.slane %v991, 1
        %v994 = vor.u32 %v989, %v993
        %v996 = vshrl.u32 %v981, 16
        %v998 = vshll.u32 %v981, 16
        %v1000 = vrot.slane %v998, 1
        %v1001 = vor.u32 %v996, %v1000
        %v1003 = vshrl.u32 %v982, 16
        %v1005 = vshll.u32 %v982, 16
        %v1007 = vrot.slane %v1005, 1
        %v1008 = vor.u32 %v1003, %v1007
        %v1010 = vshrl.u32 %v983, 16
        %v1012 = vshll.u32 %v983, 16
        %v1014 = vrot.slane %v1012, 1
        %v1015 = vor.u32 %v1010, %v1014
        %v1017 = vshrl.u32 %v984, 16
        %v1019 = vshll.u32 %v984, 16
        %v1021 = vrot.slane %v1019, 1
        %v1022 = vor.u32 %v1017, %v1021
        %v1024 = vshrl.u32 %v985, 16
        %v1026 = vshll.u32 %v985, 16
        %v1028 = vrot.slane %v1026, 1
        %v1029 = vor.u32 %v1024, %v1028
        %v1031 = vshrl.u32 %v986, 16
        %v1033 = vshll.u32 %v986, 16
        %v1035 = vrot.slane %v1033, 1
        %v1036 = vor.u32 %v1031, %v1035
        %v1038 = vshrl.u32 %v987, 16
        %v1040 = vshll.u32 %v987, 16
        %v1042 = vrot.slane %v1040, 1
        %v1043 = vor.u32 %v1038, %v1042
        %1044 = vrot.lane.b32.xlu0 %v994, 32
        %v1045 = vpop.permute.xlu0 %1044
        %1046 = vrot.lane.b32.xlu0 %v1001, 32
        %v1047 = vpop.permute.xlu0 %1046
        %1048 = vrot.lane.b32.xlu0 %v1008, 32
        %v1049 = vpop.permute.xlu0 %1048
        %1050 = vrot.lane.b32.xlu0 %v1015, 32
        %v1051 = vpop.permute.xlu0 %1050
        %1052 = vrot.lane.b32.xlu0 %v1022, 32
        %v1053 = vpop.permute.xlu0 %1052
        %1054 = vrot.lane.b32.xlu0 %v1029, 32
        %v1055 = vpop.permute.xlu0 %1054
        %1056 = vrot.lane.b32.xlu0 %v1036, 32
        %v1057 = vpop.permute.xlu0 %1056
        %1058 = vrot.lane.b32.xlu0 %v1043, 32
        %v1059 = vpop.permute.xlu0 %1058
        %v1068 = vunpack.c.l.b16 %v924
        %v1069 = vunpack.c.l.b16 %v925
        %v1070 = vunpack.c.l.b16 %v926
        %v1071 = vunpack.c.l.b16 %v927
        %v1072 = vunpack.c.l.b16 %v928
        %v1073 = vunpack.c.l.b16 %v929
        %v1074 = vunpack.c.l.b16 %v930
        %v1075 = vunpack.c.l.b16 %v931
        %v1076 = vpack.c.b16 %v965, %v1068
        %v1077 = vpack.c.b16 %v967, %v1069
        %v1078 = vpack.c.b16 %v969, %v1070
        %v1079 = vpack.c.b16 %v971, %v1071
        %v1080 = vpack.c.b16 %v973, %v1072
        %v1081 = vpack.c.b16 %v975, %v1073
        %v1082 = vpack.c.b16 %v977, %v1074
        %v1083 = vpack.c.b16 %v979, %v1075
        %v1084 = vrot.slane %v1076, 1
        %v1085 = vrot.slane %v1077, 1
        %v1086 = vrot.slane %v1078, 1
        %v1087 = vrot.slane %v1079, 1
        %v1088 = vrot.slane %v1080, 1
        %v1089 = vrot.slane %v1081, 1
        %v1090 = vrot.slane %v1082, 1
        %v1091 = vrot.slane %v1083, 1
        %1092 = vrot.lane.b32.xlu0 %v1084, 64
        %v1093 = vpop.permute.xlu0 %1092
        %1094 = vrot.lane.b32.xlu0 %v1085, 64
        %v1095 = vpop.permute.xlu0 %1094
        %1096 = vrot.lane.b32.xlu0 %v1086, 64
        %v1097 = vpop.permute.xlu0 %1096
        %1098 = vrot.lane.b32.xlu0 %v1087, 64
        %v1099 = vpop.permute.xlu0 %1098
        %1100 = vrot.lane.b32.xlu0 %v1088, 64
        %v1101 = vpop.permute.xlu0 %1100
        %1102 = vrot.lane.b32.xlu0 %v1089, 64
        %v1103 = vpop.permute.xlu0 %1102
        %1104 = vrot.lane.b32.xlu0 %v1090, 64
        %v1105 = vpop.permute.xlu0 %1104
        %1106 = vrot.lane.b32.xlu0 %v1091, 64
        %v1107 = vpop.permute.xlu0 %1106
        %v1116 = vunpack.c.l.b16 %v932
        %v1117 = vunpack.c.l.b16 %v933
        %v1118 = vunpack.c.l.b16 %v934
        %v1119 = vunpack.c.l.b16 %v935
        %v1120 = vunpack.c.l.b16 %v936
        %v1121 = vunpack.c.l.b16 %v937
        %v1122 = vunpack.c.l.b16 %v938
        %v1123 = vunpack.c.l.b16 %v939
        %v1124 = vpack.c.b16 %v1116, %v1068
        %v1125 = vpack.c.b16 %v1117, %v1069
        %v1126 = vpack.c.b16 %v1118, %v1070
        %v1127 = vpack.c.b16 %v1119, %v1071
        %v1128 = vpack.c.b16 %v1120, %v1072
        %v1129 = vpack.c.b16 %v1121, %v1073
        %v1130 = vpack.c.b16 %v1122, %v1074
        %v1131 = vpack.c.b16 %v1123, %v1075
        %v1133 = vshrl.u32 %v1124, 16
        %v1135 = vrot.slane %v1133, 1
        %v1136 = vshll.u32 %v1124, 16
        %v1138 = vrot.slane %v1136, 2
        %v1139 = vor.u32 %v1135, %v1138
        %v1141 = vshrl.u32 %v1125, 16
        %v1143 = vrot.slane %v1141, 1
        %v1144 = vshll.u32 %v1125, 16
        %v1146 = vrot.slane %v1144, 2
        %v1147 = vor.u32 %v1143, %v1146
        %v1149 = vshrl.u32 %v1126, 16
        %v1151 = vrot.slane %v1149, 1
        %v1152 = vshll.u32 %v1126, 16
        %v1154 = vrot.slane %v1152, 2
        %v1155 = vor.u32 %v1151, %v1154
        %v1157 = vshrl.u32 %v1127, 16
        %v1159 = vrot.slane %v1157, 1
        %v1160 = vshll.u32 %v1127, 16
        %v1162 = vrot.slane %v1160, 2
        %v1163 = vor.u32 %v1159, %v1162
        %v1165 = vshrl.u32 %v1128, 16
        %v1167 = vrot.slane %v1165, 1
        %v1168 = vshll.u32 %v1128, 16
        %v1170 = vrot.slane %v1168, 2
        %v1171 = vor.u32 %v1167, %v1170
        %v1173 = vshrl.u32 %v1129, 16
        %v1175 = vrot.slane %v1173, 1
        %v1176 = vshll.u32 %v1129, 16
        %v1178 = vrot.slane %v1176, 2
        %v1179 = vor.u32 %v1175, %v1178
        %v1181 = vshrl.u32 %v1130, 16
        %v1183 = vrot.slane %v1181, 1
        %v1184 = vshll.u32 %v1130, 16
        %v1186 = vrot.slane %v1184, 2
        %v1187 = vor.u32 %v1183, %v1186
        %v1189 = vshrl.u32 %v1131, 16
        %v1191 = vrot.slane %v1189, 1
        %v1192 = vshll.u32 %v1131, 16
        %v1194 = vrot.slane %v1192, 2
        %v1195 = vor.u32 %v1191, %v1194
        %1196 = vrot.lane.b32.xlu0 %v1139, 96
        %v1197 = vpop.permute.xlu0 %1196
        %1198 = vrot.lane.b32.xlu0 %v1147, 96
        %v1199 = vpop.permute.xlu0 %1198
        %1200 = vrot.lane.b32.xlu0 %v1155, 96
        %v1201 = vpop.permute.xlu0 %1200
        %1202 = vrot.lane.b32.xlu0 %v1163, 96
        %v1203 = vpop.permute.xlu0 %1202
        %1204 = vrot.lane.b32.xlu0 %v1171, 96
        %v1205 = vpop.permute.xlu0 %1204
        %1206 = vrot.lane.b32.xlu0 %v1179, 96
        %v1207 = vpop.permute.xlu0 %1206
        %1208 = vrot.lane.b32.xlu0 %v1187, 96
        %v1209 = vpop.permute.xlu0 %1208
        %1210 = vrot.lane.b32.xlu0 %v1195, 96
        %v1211 = vpop.permute.xlu0 %1210
        %v1220 = vunpack.c.l.b16 %v940
        %v1221 = vunpack.c.l.b16 %v941
        %v1222 = vunpack.c.l.b16 %v942
        %v1223 = vunpack.c.l.b16 %v943
        %v1224 = vunpack.c.l.b16 %v944
        %v1225 = vunpack.c.l.b16 %v945
        %v1226 = vunpack.c.l.b16 %v946
        %v1227 = vunpack.c.l.b16 %v947
        %v1228 = vpack.c.b16 %v1116, %v1220
        %v1229 = vpack.c.b16 %v1117, %v1221
        %v1230 = vpack.c.b16 %v1118, %v1222
        %v1231 = vpack.c.b16 %v1119, %v1223
        %v1232 = vpack.c.b16 %v1120, %v1224
        %v1233 = vpack.c.b16 %v1121, %v1225
        %v1234 = vpack.c.b16 %v1122, %v1226
        %v1235 = vpack.c.b16 %v1123, %v1227
        %v1236 = vrot.slane %v1228, 2
        %v1237 = vrot.slane %v1229, 2
        %v1238 = vrot.slane %v1230, 2
        %v1239 = vrot.slane %v1231, 2
        %v1240 = vrot.slane %v1232, 2
        %v1241 = vrot.slane %v1233, 2
        %v1242 = vrot.slane %v1234, 2
        %v1243 = vrot.slane %v1235, 2
        %v1246 = vsel %vm614, %v908, %v1045
        %v1249 = vsel %vm614, %v909, %v1047
        %v1252 = vsel %vm614, %v910, %v1049
        %v1255 = vsel %vm614, %v911, %v1051
        %v1258 = vsel %vm614, %v912, %v1053
        %v1261 = vsel %vm614, %v913, %v1055
        %v1264 = vsel %vm614, %v914, %v1057
        %v1267 = vsel %vm614, %v915, %v1059
        %v1269 = vsel %vm639, %v1246, %v1093
        %v1271 = vsel %vm639, %v1249, %v1095
        %v1273 = vsel %vm639, %v1252, %v1097
        %v1275 = vsel %vm639, %v1255, %v1099
        %v1277 = vsel %vm639, %v1258, %v1101
        %v1279 = vsel %vm639, %v1261, %v1103
        %v1281 = vsel %vm639, %v1264, %v1105
        %v1283 = vsel %vm639, %v1267, %v1107
        %v1285 = vsel %vm656, %v1269, %v1197
        %v1287 = vsel %vm656, %v1271, %v1199
        %v1289 = vsel %vm656, %v1273, %v1201
        %v1291 = vsel %vm656, %v1275, %v1203
        %v1293 = vsel %vm656, %v1277, %v1205
        %v1295 = vsel %vm656, %v1279, %v1207
        %v1297 = vsel %vm656, %v1281, %v1209
        %v1299 = vsel %vm656, %v1283, %v1211
        %v1308 = vunpack.c.l.b16 %v1285
        %v1309 = vunpack.c.l.b16 %v1236
        %v1310 = vunpack.c.l.b16 %v1287
        %v1311 = vunpack.c.l.b16 %v1237
        %v1312 = vunpack.c.l.b16 %v1289
        %v1313 = vunpack.c.l.b16 %v1238
        %v1314 = vunpack.c.l.b16 %v1291
        %v1315 = vunpack.c.l.b16 %v1239
        %v1316 = vunpack.c.l.b16 %v1293
        %v1317 = vunpack.c.l.b16 %v1240
        %v1318 = vunpack.c.l.b16 %v1295
        %v1319 = vunpack.c.l.b16 %v1241
        %v1320 = vunpack.c.l.b16 %v1297
        %v1321 = vunpack.c.l.b16 %v1242
        %v1322 = vunpack.c.l.b16 %v1299
        %v1323 = vunpack.c.l.b16 %v1243
        %v1324 = vpack.c.b16 %v1310, %v1308
        %v1325 = vpack.c.b16 %v1311, %v1309
        %v1326 = vpack.c.b16 %v1314, %v1312
        %v1327 = vpack.c.b16 %v1315, %v1313
        %v1328 = vpack.c.b16 %v1318, %v1316
        %v1329 = vpack.c.b16 %v1319, %v1317
        %v1330 = vpack.c.b16 %v1322, %v1320
        %v1331 = vpack.c.b16 %v1323, %v1321
        %v1337 = vsel %vm614, %v1325, 0
        %v1340 = vsel %vm614, %v1327, 0
        %v1343 = vsel %vm614, %v1329, 0
        %v1346 = vsel %vm614, %v1331, 0
        %1348 = vmatprep.subr.bf16.mxu0 0
        %1349 = vmatpush1.bf16.msra.mxu0 %v755
        %1350 = vmatprep.subr.bf16.mxu0 0
        %1351 = vmatpush1.bf16.msra.mxu0 %v756
        %1352 = vmatprep.subr.bf16.mxu0 0
        %1353 = vmatpush1.bf16.msra.mxu0 %v757
        %1354 = vmatprep.subr.bf16.mxu0 0
        %1355 = vmatpush1.bf16.msra.mxu0 %v758
        %1356 = vmatprep.subr.bf16.mxu0 0
        %1357 = vmatpush1.bf16.msra.mxu0 %v759
        %1358 = vmatprep.subr.bf16.mxu0 0
        %1359 = vmatpush1.bf16.msra.mxu0 %v760
        %1360 = vmatprep.subr.bf16.mxu0 0
        %1361 = vmatpush1.bf16.msra.mxu0 %v761
        %1362 = vmatprep.subr.bf16.mxu0 0
        %1363 = vmatpush1.bf16.msra.mxu0 %v762
        %1364 = vmatprep.subr.bf16.mxu0 0
        %1365 = vmatpush1.bf16.msra.mxu0 %v763
        %1366 = vmatprep.subr.bf16.mxu0 0
        %1367 = vmatpush1.bf16.msra.mxu0 %v764
        %1368 = vmatprep.subr.bf16.mxu0 0
        %1369 = vmatpush1.bf16.msra.mxu0 0
        %1370 = vmatprep.subr.bf16.mxu0 0
        %1371 = vmatpush1.bf16.msra.mxu0 0
        %1372 = vmatprep.subr.bf16.mxu0 0
        %1373 = vmatpush1.bf16.msra.mxu0 0
        %1374 = vmatprep.subr.bf16.mxu0 0
        %1375 = vmatpush1.bf16.msra.mxu0 0
        %1376 = vmatprep.subr.bf16.mxu0 0
        %1377 = vmatpush1.bf16.msra.mxu0 0
        %1378 = vmatprep.subr.bf16.mxu0 0
        %1379 = vmatpush1.bf16.msra.mxu0 0
        %1380 = vmatprep.mubr.bf16.mxu0 %v1337
        %1381 = vmatmul.mubr.bf16.gmra.mrb[0].mxu0 %v1324
        %v1382 = vpop.f32.mrb[0].mxu0
        %v1383 = vadd.f32 %v677, %v1382
        %v1384 = vpop.f32.mrb[0].mxu0
        %v1385 = vpop.f32.mrb[0].mxu0
        %v1386 = vadd.f32 %v677, %v1385
        %v1387 = vpop.f32.mrb[0].mxu0
        %1388 = vmatprep.mubr.bf16.mxu0 %v1340
        %1389 = vmatmul.mubr.bf16.gmra.mrb[0].mxu0 %v1326
        %v1390 = vpop.f32.mrb[0].mxu0
        %v1391 = vadd.f32 %v677, %v1390
        %v1392 = vpop.f32.mrb[0].mxu0
        %v1393 = vpop.f32.mrb[0].mxu0
        %v1394 = vadd.f32 %v677, %v1393
        %v1395 = vpop.f32.mrb[0].mxu0
        %1396 = vmatprep.mubr.bf16.mxu0 %v1343
        %1397 = vmatmul.mubr.bf16.gmra.mrb[0].mxu0 %v1328
        %v1398 = vpop.f32.mrb[0].mxu0
        %v1399 = vadd.f32 %v677, %v1398
        %v1400 = vpop.f32.mrb[0].mxu0
        %v1401 = vpop.f32.mrb[0].mxu0
        %v1402 = vadd.f32 %v677, %v1401
        %v1403 = vpop.f32.mrb[0].mxu0
        %1404 = vmatprep.mubr.bf16.mxu0 %v1346
        %1405 = vmatmul.mubr.bf16.gmra.mrb[0].mxu0 %v1330
        %v1406 = vpop.f32.mrb[0].mxu0
        %v1407 = vadd.f32 %v677, %v1406
        %v1408 = vpop.f32.mrb[0].mxu0
        %v1409 = vpop.f32.mrb[0].mxu0
        %v1410 = vadd.f32 %v677, %v1409
        %v1411 = vpop.f32.mrb[0].mxu0
        %1412 = vdwg.mxu0
        %v1413 = vmax.f32 %v1383, 0.0
        %v1414 = vmax.f32 %v1386, 0.0
        %v1415 = vmax.f32 %v1391, 0.0
        %v1416 = vmax.f32 %v1394, 0.0
        %v1417 = vmax.f32 %v1399, 0.0
        %v1418 = vmax.f32 %v1402, 0.0
        %v1419 = vmax.f32 %v1407, 0.0
        %v1420 = vmax.f32 %v1410, 0.0
        %v1421 = vlaneseq
        %v1422 = vshrl.u32 %v1421, 7
        %v1423 = vadd.s32 %v1422, 8
        %v1424 = vlaneseq
        %v1425 = vshrl.u32 %v1424, 7
        %v1426 = vsub.s32 0, %v1425
        %v1427 = vrot.slane %v277, %v1426
        %vm1428 = vcmp.lt.s32.totalorder %v1423, %v1427
        %v1429 = vsel %vm1428, 1, 0
        %v1430 = vcvt.s32.f32 %v1429
        %v1431 = vmul.f32 %v1413, %v1430
        %v1432 = vmul.f32 %v1414, %v1430
        %v1433 = vmul.f32 %v1415, %v1430
        %v1434 = vmul.f32 %v1416, %v1430
        %v1435 = vmul.f32 %v1417, %v1430
        %v1436 = vmul.f32 %v1418, %v1430
        %v1437 = vmul.f32 %v1419, %v1430
        %v1438 = vmul.f32 %v1420, %v1430
        %v1439 = vrot.slane %v1431, 4
        %v1440 = vmax.f32 %v1431, %v1439
        %v1441 = vrot.slane %v1440, 2
        %v1442 = vmax.f32 %v1440, %v1441
        %v1443 = vrot.slane %v1442, 1
        %v1444 = vmax.f32 %v1442, %v1443
        %v1445 = vrot.slane %v1432, 4
        %v1446 = vmax.f32 %v1432, %v1445
        %v1447 = vrot.slane %v1446, 2
        %v1448 = vmax.f32 %v1446, %v1447
        %v1449 = vrot.slane %v1448, 1
        %v1450 = vmax.f32 %v1448, %v1449
        %v1451 = vrot.slane %v1433, 4
        %v1452 = vmax.f32 %v1433, %v1451
        %v1453 = vrot.slane %v1452, 2
        %v1454 = vmax.f32 %v1452, %v1453
        %v1455 = vrot.slane %v1454, 1
        %v1456 = vmax.f32 %v1454, %v1455
        %v1457 = vrot.slane %v1434, 4
        %v1458 = vmax.f32 %v1434, %v1457
        %v1459 = vrot.slane %v1458, 2
        %v1460 = vmax.f32 %v1458, %v1459
        %v1461 = vrot.slane %v1460, 1
        %v1462 = vmax.f32 %v1460, %v1461
        %v1463 = vrot.slane %v1435, 4
        %v1464 = vmax.f32 %v1435, %v1463
        %v1465 = vrot.slane %v1464, 2
        %v1466 = vmax.f32 %v1464, %v1465
        %v1467 = vrot.slane %v1466, 1
        %v1468 = vmax.f32 %v1466, %v1467
        %v1469 = vrot.slane %v1436, 4
        %v1470 = vmax.f32 %v1436, %v1469
        %v1471 = vrot.slane %v1470, 2
        %v1472 = vmax.f32 %v1470, %v1471
        %v1473 = vrot.slane %v1472, 1
        %v1474 = vmax.f32 %v1472, %v1473
        %v1475 = vrot.slane %v1437, 4
        %v1476 = vmax.f32 %v1437, %v1475
        %v1477 = vrot.slane %v1476, 2
        %v1478 = vmax.f32 %v1476, %v1477
        %v1479 = vrot.slane %v1478, 1
        %v1480 = vmax.f32 %v1478, %v1479
        %v1481 = vrot.slane %v1438, 4
        %v1482 = vmax.f32 %v1438, %v1481
        %v1483 = vrot.slane %v1482, 2
        %v1484 = vmax.f32 %v1482, %v1483
        %v1485 = vrot.slane %v1484, 1
        %v1486 = vmax.f32 %v1484, %v1485
        %v1487 = vmax.f32 %v865, %v1444
        %v1488 = vmax.f32 %v871, %v1450
        %v1489 = vmax.f32 %v877, %v1456
        %v1490 = vmax.f32 %v883, %v1462
        %v1491 = vmax.f32 %v889, %v1468
        %v1492 = vmax.f32 %v895, %v1474
        %v1493 = vmax.f32 %v901, %v1480
        %v1494 = vmax.f32 %v907, %v1486
        %v1495 = vpack.c.bf16 %v1487, %v1487
        %v1496 = vpack.c.bf16 %v1488, %v1488
        %v1497 = vpack.c.bf16 %v1489, %v1489
        %v1498 = vpack.c.bf16 %v1490, %v1490
        %v1499 = vpack.c.bf16 %v1491, %v1491
        %v1500 = vpack.c.bf16 %v1492, %v1492
        %v1501 = vpack.c.bf16 %v1493, %v1493
        %v1502 = vpack.c.bf16 %v1494, %v1494
        %v1503 = vld [vmem:[%s4] sm:$0xf]
        %v1504 = vld [vmem:[%s4 + $0x4] sm:$0xf]
        %v1505 = vld [vmem:[%s4 + $0x8] sm:$0xf]
        %v1506 = vld [vmem:[%s4 + $0xc] sm:$0xf]
        %v1507 = vld [vmem:[%s4 + $0x10] sm:$0xf]
        %v1508 = vld [vmem:[%s4 + $0x14] sm:$0xf]
        %v1509 = vld [vmem:[%s4 + $0x18] sm:$0xf]
        %v1510 = vld [vmem:[%s4 + $0x1c] sm:$0xf]
        %v1511 = vld [vmem:[%s4 + $0x20] sm:$0xf]
        %v1512 = vld [vmem:[%s4 + $0x24] sm:$0xf]
        %v1513 = vld [vmem:[%s4 + $0x28] sm:$0xf]
        %v1514 = vld [vmem:[%s4 + $0x2c] sm:$0xf]
        %v1515 = vld [vmem:[%s4 + $0x30] sm:$0xf]
        %v1516 = vld [vmem:[%s4 + $0x34] sm:$0xf]
        %v1517 = vld [vmem:[%s4 + $0x38] sm:$0xf]
        %v1518 = vld [vmem:[%s4 + $0x3c] sm:$0xf]
        %v1519 = vld [vmem:[%s5] sm:$0x1]
        %v1521 = vlaneseq
        %v1522 = vshrl.u32 %v1521, 7
        %v1523 = vsub.s32 0, %v1522
        %v1524 = vrot.slane %v1519, %v1523
        %v1534 = vunpack.c.l.b16 %v1495
        %v1535 = vunpack.c.l.b16 %v1496
        %v1536 = vunpack.c.l.b16 %v1497
        %v1537 = vunpack.c.l.b16 %v1498
        %v1538 = vunpack.c.l.b16 %v1499
        %v1539 = vunpack.c.l.b16 %v1500
        %v1540 = vunpack.c.l.b16 %v1501
        %v1541 = vunpack.c.l.b16 %v1502
        %vm1542 = vcmask 1041409
        %v1543 = vsel %vm1542, %v1535, %v1534
        %vm1544 = vcmask 1042434
        %v1545 = vsel %vm1544, %v1536, %v1543
        %vm1546 = vcmask 1043459
        %v1547 = vsel %vm1546, %v1537, %v1545
        %vm1548 = vcmask 1044484
        %v1549 = vsel %vm1548, %v1538, %v1547
        %vm1550 = vcmask 1045509
        %v1551 = vsel %vm1550, %v1539, %v1549
        %vm1552 = vcmask 1046534
        %v1553 = vsel %vm1552, %v1540, %v1551
        %vm1554 = vcmask 1047559
        %v1555 = vsel %vm1554, %v1541, %v1553
        %v1556 = vpack.c.b16 %v1555, %v1555
        %v1574 = vunpack.c.l.b16 %v1503
        %v1575 = vunpack.c.l.b16 %v1504
        %v1576 = vunpack.c.l.b16 %v1505
        %v1577 = vunpack.c.l.b16 %v1506
        %v1578 = vunpack.c.l.b16 %v1507
        %v1579 = vunpack.c.l.b16 %v1508
        %v1580 = vunpack.c.l.b16 %v1509
        %v1581 = vunpack.c.l.b16 %v1510
        %v1582 = vunpack.c.l.b16 %v1511
        %v1583 = vunpack.c.l.b16 %v1512
        %v1584 = vunpack.c.l.b16 %v1513
        %v1585 = vunpack.c.l.b16 %v1514
        %v1586 = vunpack.c.l.b16 %v1515
        %v1587 = vunpack.c.l.b16 %v1516
        %v1588 = vunpack.c.l.b16 %v1517
        %v1589 = vunpack.c.l.b16 %v1518
        %v1590 = vpack.c.b16 %v1575, %v1574
        %v1591 = vpack.c.b16 %v1577, %v1576
        %v1592 = vpack.c.b16 %v1579, %v1578
        %v1593 = vpack.c.b16 %v1581, %v1580
        %v1594 = vpack.c.b16 %v1583, %v1582
        %v1595 = vpack.c.b16 %v1585, %v1584
        %v1596 = vpack.c.b16 %v1587, %v1586
        %v1597 = vpack.c.b16 %v1589, %v1588
        %1606 = vmatprep.subr.bf16.mxu0 0
        %1607 = vmatpush1.bf16.msra.mxu0 %v1590
        %1608 = vmatprep.subr.bf16.mxu0 0
        %1609 = vmatpush1.bf16.msra.mxu0 %v1591
        %1610 = vmatprep.subr.bf16.mxu0 0
        %1611 = vmatpush1.bf16.msra.mxu0 %v1592
        %1612 = vmatprep.subr.bf16.mxu0 0
        %1613 = vmatpush1.bf16.msra.mxu0 %v1593
        %1614 = vmatprep.subr.bf16.mxu0 0
        %1615 = vmatpush1.bf16.msra.mxu0 %v1594
        %1616 = vmatprep.subr.bf16.mxu0 0
        %1617 = vmatpush1.bf16.msra.mxu0 %v1595
        %1618 = vmatprep.subr.bf16.mxu0 0
        %1619 = vmatpush1.bf16.msra.mxu0 %v1596
        %1620 = vmatprep.subr.bf16.mxu0 0
        %1621 = vmatpush1.bf16.msra.mxu0 %v1597
        %1622 = vmatprep.subr.bf16.mxu0 0
        %1623 = vmatpush1.bf16.msra.mxu0 0
        %1624 = vmatprep.subr.bf16.mxu0 0
        %1625 = vmatpush1.bf16.msra.mxu0 0
        %1626 = vmatprep.subr.bf16.mxu0 0
        %1627 = vmatpush1.bf16.msra.mxu0 0
        %1628 = vmatprep.subr.bf16.mxu0 0
        %1629 = vmatpush1.bf16.msra.mxu0 0
        %1630 = vmatprep.subr.bf16.mxu0 0
        %1631 = vmatpush1.bf16.msra.mxu0 0
        %1632 = vmatprep.subr.bf16.mxu0 0
        %1633 = vmatpush1.bf16.msra.mxu0 0
        %1634 = vmatprep.subr.bf16.mxu0 0
        %1635 = vmatpush1.bf16.msra.mxu0 0
        %1636 = vmatprep.subr.bf16.mxu0 0
        %1637 = vmatpush1.bf16.msra.mxu0 0
        %1638 = vmatprep.mubr.bf16.mxu0 0
        %1639 = vmatmul.mubr.bf16.gmra.mrb[0].mxu0 %v1556
        %v1640 = vpop.f32.mrb[0].mxu0
        %v1641 = vadd.f32 %v1524, %v1640
        %v1642 = vpop.f32.mrb[0].mxu0
        %v1643 = vpop.f32.mrb[0].mxu0
        %v1644 = vpop.f32.mrb[0].mxu0
        %1645 = vdwg.mxu0
        %1646 = vst [vmem:[%s247] sm:$0xff] %v1641
        %s1647 = sand.u32 %s159, 1
        %s1648 = scalar_lea.sflag [#allocation3], %s1647
        %s1649 = sand.u32 %s159, 1
        %s1650 = smul.addr %s1649, 8
        %s1651 = scalar_lea.vmem [#allocation2], %s1650
        // Predicated region
        $region45: #{tpu_custom_call.1} parent=43 // pred_check
          %p1652 = pneg %p169
        $region46: #{tpu_custom_call.1} parent=43 // pred_check_branch
          %1654 = sbr.rel (%p1652) target = $region48
        $region47: #{tpu_custom_call.1} parent=43 // pred_region
          %s1656 = ssub.s32 128, 128
          %1657 = vsyncadd %s1648, %s1656
          %s1658 = smul.addr %s20, 128
          %s1659 = scalar_lea.hbm %s6, %s1658
          %s1661 = sshll.u32 %s1651, 4
          %s1662 = int_to_ptr.vmem [resolvable:$true] %s1661
          %1664 = dma.vmem_to_hbm [thread:$0]  %s1662, 128, %s1659, %s1648
        $region48: #{tpu_custom_call.1} parent=43 // pred_fallthru
          _
      $region44: #{tpu_custom_call.1} parent=5 // pred_fallthru
        _
      %p1665 = scmp.le.s32.totalorder 2, %s15
      // Predicated region
      $region49: #{tpu_custom_call.1} parent=5 // pred_check
        %p1666 = pneg %p1665
      $region50: #{tpu_custom_call.1} parent=5 // pred_check_branch
        %1668 = sbr.rel (%p1666) target = $region52
      $region51: #{tpu_custom_call.1} parent=5 // pred_region
        %s1669 = ssub.s32 %s15, 2
        // Predicated region
        $region53: #{tpu_custom_call.1} parent=51 // pred_check
          %p1670 = pneg %p175
        $region54: #{tpu_custom_call.1} parent=51 // pred_check_branch
          %1672 = sbr.rel (%p1670) target = $region56
        $region55: #{tpu_custom_call.1} parent=51 // pred_region
          %s1673 = sand.u32 %s160, 1
          %s1674 = scalar_lea.sflag [#allocation3], %s1673
          %s1675 = sand.u32 %s160, 1
          %s1676 = smul.addr %s1675, 8
          %s1677 = scalar_lea.vmem [#allocation2], %s1676
          %1678 = dma.done %s1674, 128
        $region56: #{tpu_custom_call.1} parent=51 // pred_fallthru
          _
      $region52: #{tpu_custom_call.1} parent=5 // pred_fallthru
        _
    $region6: #{tpu_custom_call.1} parent=1 // loop_footer
      %s19 = sadd.s32 1, %s15
    $region7: #{tpu_custom_call.1} parent=1 // loop_footer_branch
      %14 = sbr.rel target = $region3
    $region8: #{tpu_custom_call.1} parent=1 // loop_exit
      _
    %1679 = vsyncpa [#allocation3], 1
    %s1680 = scalar_lea.sflag [#allocation3], 1
    %1681 = vsyncpa %s1680, 1

// kernel: tpu_custom_call.1
$region0: #{tpu_custom_call.1}
  #allocation0 [shape = 'u32[]', space=smem, size = 0x4, offset = 0x4, fixed_abs, tag = 'smem constant byte address 0x4 - core index']
  #allocation1 [shape = 'u32[144,128]{1,0:T(1,128)}', space=vmem, size = 0x12000, scoped, tag = 'internal scratch']
  %s0 = inlined_call_operand.vmem [shape: bf16[16,20,32], index: 0, kind: input, shape index: {}]
  %s1 = inlined_call_operand.vmem [shape: bf16[160,128], index: 1, kind: input, shape index: {}]
  %s2 = inlined_call_operand.vmem [shape: f32[1,128], index: 2, kind: input, shape index: {}]
  %s3 = inlined_call_operand.vmem [shape: s32[1,128], index: 3, kind: input, shape index: {}]
  %s4 = inlined_call_operand.vmem [shape: bf16[128,128], index: 4, kind: input, shape index: {}]
  %s5 = inlined_call_operand.vmem [shape: f32[1,128], index: 5, kind: input, shape index: {}]
  %s6 = inlined_call_operand.hbm [shape: f32[16,128], index: 6, kind: output, shape index: {}]
  %s7 = sld [smem:[#allocation0]]
  $region57: #{tpu_custom_call.1} parent=0
    _
  %s9 = ssub.s32 1, %s7
  %s10 = scalar_select 0, %s9, %s7
  $region1: #{tpu_custom_call.1} parent=0
    #allocation2 [shape = 'u8[8192]{0}', space=vmem, size = 0x2000, scoped, tag = 'output window, operand 0']
    #allocation3 [shape = 's32[2]{0}', space=sflag, size = 0x8, scoped, tag = 'scoped memory for tpu_custom_call.1']
    %11 = vsyncpa [#allocation3], 0
    %s12 = scalar_lea.sflag [#allocation3], 1
    %13 = vsyncpa %s12, 0
    loop: start=0, step=1, limit=4
    $region2: #{tpu_custom_call.1} parent=1 // loop_pre_header
      _
    $region3: #{tpu_custom_call.1} parent=1 // loop_header
      %s15 = sphi 0, %s19
      %p16 = scmp.ge.s32.totalorder %s15, 4
      %s25 = sphi 0, %s27
      %s28 = sphi 0, %s25
      %s29 = sphi 0, %s28
      %s45 = sphi 0, %s29
      %s49 = sphi 0, %s49
      %s51 = sphi 0, %s49
      %s52 = sphi 0, %s51
      %s66 = sphi 0, %s52
      %s70 = sphi 0, %s70
      %s72 = sphi 0, %s70
      %s73 = sphi 0, %s72
      %s87 = sphi 0, %s73
      %s91 = sphi 0, %s91
      %s93 = sphi 0, %s91
      %s94 = sphi 0, %s93
      %s108 = sphi 0, %s94
      %s112 = sphi 0, %s112
      %s114 = sphi 0, %s112
      %s115 = sphi 0, %s114
      %s129 = sphi 0, %s115
      %s133 = sphi 0, %s133
      %s135 = sphi 0, %s133
      %s136 = sphi 0, %s135
      %s150 = sphi 0, %s136
      %s156 = sphi 0, %s158
      %s159 = sphi 0, %s156
      %s160 = sphi 0, %s159
      %s176 = sphi 0, %s160
    $region4: #{tpu_custom_call.1} parent=1 // loop_header_branch
      %18 = sbr.rel (%p16) target = $region8
    $region5: #{tpu_custom_call.1} parent=1 // loop_body
      %s20 = ssub.s32 %s15, 1
      %s21 = ssub.s32 %s15, 2
      %s22 = sadd.s32 %s15, 1
      %s23 = ssub.s32 %s15, %s22
      %p24 = scmp.eq.s32.totalorder %s23, 0
      %s26 = sadd.s32 %s25, 1
      %s27 = scalar_select %p24, %s25, %s26
      %p30 = pneg %p24
      %p31 = scmp.eq.s32.totalorder %s15, 1
      %p32 = por %p30, %p31
      %p33 = scmp.ne.s32.totalorder %s25, %s28
      %p34 = scmp.eq.s32.totalorder %s15, 0
      %p35 = por %p33, %p34
      %p36 = scmp.ne.s32.totalorder %s25, %s28
      %p37 = scmp.eq.s32.totalorder %s20, 1
      %p38 = por %p36, %p37
      %p39 = scmp.ne.s32.totalorder %s28, %s29
      %p40 = scmp.eq.s32.totalorder %s20, 0
      %p41 = por %p39, %p40
      %p42 = scmp.ne.s32.totalorder %s28, %s29
      %p43 = scmp.eq.s32.totalorder %s21, 1
      %p44 = por %p42, %p43
      %p46 = scmp.ne.s32.totalorder %s29, %s45
      %p47 = scmp.eq.s32.totalorder %s21, 0
      %p48 = por %p46, %p47
      %s50 = sadd.s32 %s49, 1
      %p53 = scmp.eq.s32.totalorder %s15, 1
      %p54 = scmp.ne.s32.totalorder %s49, %s51
      %p55 = scmp.eq.s32.totalorder %s15, 0
      %p56 = por %p54, %p55
      %p57 = scmp.ne.s32.totalorder %s49, %s51
      %p58 = scmp.eq.s32.totalorder %s20, 1
      %p59 = por %p57, %p58
      %p60 = scmp.ne.s32.totalorder %s51, %s52
      %p61 = scmp.eq.s32.totalorder %s20, 0
      %p62 = por %p60, %p61
      %p63 = scmp.ne.s32.totalorder %s51, %s52
      %p64 = scmp.eq.s32.totalorder %s21, 1
      %p65 = por %p63, %p64
      %p67 = scmp.ne.s32.totalorder %s52, %s66
      %p68 = scmp.eq.s32.totalorder %s21, 0
      %p69 = por %p67, %p68
      %s71 = sadd.s32 %s70, 1
      %p74 = scmp.eq.s32.totalorder %s15, 1
      %p75 = scmp.ne.s32.totalorder %s70, %s72
      %p76 = scmp.eq.s32.totalorder %s15, 0
      %p77 = por %p75, %p76
      %p78 = scmp.ne.s32.totalorder %s70, %s72
      %p79 = scmp.eq.s32.totalorder %s20, 1
      %p80 = por %p78, %p79
      %p81 = scmp.ne.s32.totalorder %s72, %s73
      %p82 = scmp.eq.s32.totalorder %s20, 0
      %p83 = por %p81, %p82
      %p84 = scmp.ne.s32.totalorder %s72, %s73
      %p85 = scmp.eq.s32.totalorder %s21, 1
      %p86 = por %p84, %p85
      %p88 = scmp.ne.s32.totalorder %s73, %s87
      %p89 = scmp.eq.s32.totalorder %s21, 0
      %p90 = por %p88, %p89
      %s92 = sadd.s32 %s91, 1
      %p95 = scmp.eq.s32.totalorder %s15, 1
      %p96 = scmp.ne.s32.totalorder %s91, %s93
      %p97 = scmp.eq.s32.totalorder %s15, 0
      %p98 = por %p96, %p97
      %p99 = scmp.ne.s32.totalorder %s91, %s93
      %p100 = scmp.eq.s32.totalorder %s20, 1
      %p101 = por %p99, %p100
      %p102 = scmp.ne.s32.totalorder %s93, %s94
      %p103 = scmp.eq.s32.totalorder %s20, 0
      %p104 = por %p102, %p103
      %p105 = scmp.ne.s32.totalorder %s93, %s94
      %p106 = scmp.eq.s32.totalorder %s21, 1
      %p107 = por %p105, %p106
      %p109 = scmp.ne.s32.totalorder %s94, %s108
      %p110 = scmp.eq.s32.totalorder %s21, 0
      %p111 = por %p109, %p110
      %s113 = sadd.s32 %s112, 1
      %p116 = scmp.eq.s32.totalorder %s15, 1
      %p117 = scmp.ne.s32.totalorder %s112, %s114
      %p118 = scmp.eq.s32.totalorder %s15, 0
      %p119 = por %p117, %p118
      %p120 = scmp.ne.s32.totalorder %s112, %s114
      %p121 = scmp.eq.s32.totalorder %s20, 1
      %p122 = por %p120, %p121
      %p123 = scmp.ne.s32.totalorder %s114, %s115
      %p124 = scmp.eq.s32.totalorder %s20, 0
      %p125 = por %p123, %p124
      %p126 = scmp.ne.s32.totalorder %s114, %s115
      %p127 = scmp.eq.s32.totalorder %s21, 1
      %p128 = por %p126, %p127
      %p130 = scmp.ne.s32.totalorder %s115, %s129
      %p131 = scmp.eq.s32.totalorder %s21, 0
      %p132 = por %p130, %p131
      %s134 = sadd.s32 %s133, 1
      %p137 = scmp.eq.s32.totalorder %s15, 1
      %p138 = scmp.ne.s32.totalorder %s133, %s135
      %p139 = scmp.eq.s32.totalorder %s15, 0
      %p140 = por %p138, %p139
      %p141 = scmp.ne.s32.totalorder %s133, %s135
      %p142 = scmp.eq.s32.totalorder %s20, 1
      %p143 = por %p141, %p142
      %p144 = scmp.ne.s32.totalorder %s135, %s136
      %p145 = scmp.eq.s32.totalorder %s20, 0
      %p146 = por %p144, %p145
      %p147 = scmp.ne.s32.totalorder %s135, %s136
      %p148 = scmp.eq.s32.totalorder %s21, 1
      %p149 = por %p147, %p148
      %p151 = scmp.ne.s32.totalorder %s136, %s150
      %p152 = scmp.eq.s32.totalorder %s21, 0
      %p153 = por %p151, %p152
      %s154 = ssub.s32 %s15, %s22
      %p155 = scmp.eq.s32.totalorder %s154, 0
      %s157 = sadd.s32 %s156, 1
      %s158 = scalar_select %p155, %s156, %s157
      %p161 = pneg %p155
      %p162 = scmp.eq.s32.totalorder %s15, 1
      %p163 = por %p161, %p162
      %p164 = scmp.ne.s32.totalorder %s156, %s159
      %p165 = scmp.eq.s32.totalorder %s15, 0
      %p166 = por %p164, %p165
      %p167 = scmp.ne.s32.totalorder %s156, %s159
      %p168 = scmp.eq.s32.totalorder %s20, 1
      %p169 = por %p167, %p168
      %p170 = scmp.ne.s32.totalorder %s159, %s160
      %p171 = scmp.eq.s32.totalorder %s20, 0
      %p172 = por %p170, %p171
      %p173 = scmp.ne.s32.totalorder %s159, %s160
      %p174 = scmp.eq.s32.totalorder %s21, 1
      %p175 = por %p173, %p174
      %p177 = scmp.ne.s32.totalorder %s160, %s176
      %p178 = scmp.eq.s32.totalorder %s21, 0
      %p179 = por %p177, %p178
      %p180 = scmp.le.s32.totalorder 1, %s15
      %p181 = scmp.lt.s32.totalorder %s15, 3
      %p182 = pnand %p180, %p181
      %p183 = pneg %p182
      // Predicated region
      $region9: #{tpu_custom_call.1} parent=5 // pred_check
        _
      $region10: #{tpu_custom_call.1} parent=5 // pred_check_branch
        %185 = sbr.rel (%p182) target = $region12
      $region11: #{tpu_custom_call.1} parent=5 // pred_region
        %s186 = ssub.s32 %s15, 1
        // Predicated region
        $region13: #{tpu_custom_call.1} parent=11 // pred_check
          %p187 = pneg %p62
        $region14: #{tpu_custom_call.1} parent=11 // pred_check_branch
          %189 = sbr.rel (%p187) target = $region16
        $region15: #{tpu_custom_call.1} parent=11 // pred_region
          _
        $region16: #{tpu_custom_call.1} parent=11 // pred_fallthru
          _
        // Predicated region
        $region17: #{tpu_custom_call.1} parent=11 // pred_check
          %p190 = pneg %p83
        $region18: #{tpu_custom_call.1} parent=11 // pred_check_branch
          %192 = sbr.rel (%p190) target = $region20
        $region19: #{tpu_custom_call.1} parent=11 // pred_region
          _
        $region20: #{tpu_custom_call.1} parent=11 // pred_fallthru
          _
        // Predicated region
        $region21: #{tpu_custom_call.1} parent=11 // pred_check
          %p193 = pneg %p104
        $region22: #{tpu_custom_call.1} parent=11 // pred_check_branch
          %195 = sbr.rel (%p193) target = $region24
        $region23: #{tpu_custom_call.1} parent=11 // pred_region
          _
        $region24: #{tpu_custom_call.1} parent=11 // pred_fallthru
          _
        // Predicated region
        $region25: #{tpu_custom_call.1} parent=11 // pred_check
          %p196 = pneg %p125
        $region26: #{tpu_custom_call.1} parent=11 // pred_check_branch
          %198 = sbr.rel (%p196) target = $region28
        $region27: #{tpu_custom_call.1} parent=11 // pred_region
          _
        $region28: #{tpu_custom_call.1} parent=11 // pred_fallthru
          _
        // Predicated region
        $region29: #{tpu_custom_call.1} parent=11 // pred_check
          %p199 = pneg %p146
        $region30: #{tpu_custom_call.1} parent=11 // pred_check_branch
          %201 = sbr.rel (%p199) target = $region32
        $region31: #{tpu_custom_call.1} parent=11 // pred_region
          _
        $region32: #{tpu_custom_call.1} parent=11 // pred_fallthru
          _
      $region12: #{tpu_custom_call.1} parent=5 // pred_fallthru
        _
      %p202 = scmp.lt.s32.totalorder %s15, 2
      // Predicated region
      $region33: #{tpu_custom_call.1} parent=5 // pred_check
        %p203 = pneg %p202
      $region34: #{tpu_custom_call.1} parent=5 // pred_check_branch
        %205 = sbr.rel (%p203) target = $region36
      $region35: #{tpu_custom_call.1} parent=5 // pred_region
        // Predicated region
        $region37: #{tpu_custom_call.1} parent=35 // pred_check
          %p206 = pneg %p35
        $region38: #{tpu_custom_call.1} parent=35 // pred_check_branch
          %208 = sbr.rel (%p206) target = $region40
        $region39: #{tpu_custom_call.1} parent=35 // pred_region
          %s209 = smul.u32 8, %s15
          %p210 = scmp.lt.s32.totalorder %s209, 15
          %s211 = scalar_select %p210, %s209, 15
          %s212 = smul.addr %s211, 3
          %s213 = smul.addr %s212, 4
          %s214 = scalar_lea.vmem %s0, %s213
          %s215 = smul.u32 8, %s15
        $region40: #{tpu_custom_call.1} parent=35 // pred_fallthru
          _
      $region36: #{tpu_custom_call.1} parent=5 // pred_fallthru
        _
      %p216 = scmp.le.s32.totalorder 1, %s15
      %p217 = scmp.lt.s32.totalorder %s15, 3
      %p218 = pnand %p216, %p217
      %p219 = pneg %p218
      // Predicated region
      $region41: #{tpu_custom_call.1} parent=5 // pred_check
        _
      $region42: #{tpu_custom_call.1} parent=5 // pred_check_branch
        %221 = sbr.rel (%p218) target = $region44
      $region43: #{tpu_custom_call.1} parent=5 // pred_region
        %s222 = ssub.s32 %s15, 1
        %s223 = smul.u32 8, %s20
        %p224 = scmp.lt.s32.totalorder %s223, 15
        %s225 = scalar_select %p224, %s223, 15
        %s226 = smul.addr %s225, 3
        %s227 = smul.addr %s226, 4
        %s228 = scalar_lea.vmem %s0, %s227
        %p229 = pneg %p41
        %p230 = pneg %p38
        %p231 = pneg %p62
        %p232 = pneg %p59
        %p233 = pneg %p83
        %p234 = pneg %p80
        %p235 = pneg %p104
        %p236 = pneg %p101
        %p237 = pneg %p125
        %p238 = pneg %p122
        %p239 = pneg %p146
        %p240 = pneg %p143
        %p241 = pneg %p172
        %p242 = pneg %p169
        %s243 = sand.u32 %s159, 1
        %s244 = scalar_lea.sflag [#allocation3], %s243
        %s245 = sand.u32 %s159, 1
        %s246 = smul.addr %s245, 8
        %s247 = scalar_lea.vmem [#allocation2], %s246
        %s248 = smul.u32 8, %s20
        %p249 = scmp.lt.s32.totalorder %s248, 15
        %s250 = scalar_select %p249, %s248, 15
        %s251 = smul.addr %s250, 3
        %s252 = smul.addr %s251, 4
        %s253 = scalar_lea.vmem %s0, %s252
        %s254 = smul.u32 8, %s20
        %v256 = vld [vmem:[%s1] sm:$0xf]
        %v257 = vld [vmem:[%s1 + $0x4] sm:$0xf]
        %v258 = vld [vmem:[%s1 + $0x8] sm:$0xf]
        %v259 = vld [vmem:[%s1 + $0xc] sm:$0xf]
        %v260 = vld [vmem:[%s1 + $0x10] sm:$0xf]
        %v261 = vld [vmem:[%s1 + $0x14] sm:$0xf]
        %v262 = vld [vmem:[%s1 + $0x18] sm:$0xf]
        %v263 = vld [vmem:[%s1 + $0x1c] sm:$0xf]
        %v264 = vld [vmem:[%s1 + $0x20] sm:$0xf]
        %v265 = vld [vmem:[%s1 + $0x24] sm:$0xf]
        %v266 = vld [vmem:[%s1 + $0x28] sm:$0xf]
        %v267 = vld [vmem:[%s1 + $0x2c] sm:$0xf]
        %v268 = vld [vmem:[%s1 + $0x30] sm:$0xf]
        %v269 = vld [vmem:[%s1 + $0x34] sm:$0xf]
        %v270 = vld [vmem:[%s1 + $0x38] sm:$0xf]
        %v271 = vld [vmem:[%s1 + $0x3c] sm:$0xf]
        %v272 = vld [vmem:[%s1 + $0x40] sm:$0xf]
        %v273 = vld [vmem:[%s1 + $0x44] sm:$0xf]
        %v274 = vld [vmem:[%s1 + $0x48] sm:$0xf]
        %v275 = vld [vmem:[%s1 + $0x4c] sm:$0xf]
        %v276 = vld [vmem:[%s2] sm:$0x1]
        %v277 = vld [vmem:[%s3] sm:$0x1]
        %v278 = vld [vmem:[%s253] sm:$0xf]
        %v279 = vld [vmem:[%s253 + $0xc] sm:$0xf]
        %v280 = vld [vmem:[%s253 + $0x18] sm:$0xf]
        %v281 = vld [vmem:[%s253 + $0x24] sm:$0xf]
        %v282 = vld [vmem:[%s253 + $0x30] sm:$0xf]
        %v283 = vld [vmem:[%s253 + $0x3c] sm:$0xf]
        %v284 = vld [vmem:[%s253 + $0x48] sm:$0xf]
        %v285 = vld [vmem:[%s253 + $0x54] sm:$0xf]
        %v286 = vld [vmem:[%s253 + $0x4] sm:$0x1]
        %v287 = vld [vmem:[%s253 + $0x10] sm:$0x1]
        %v288 = vld [vmem:[%s253 + $0x1c] sm:$0x1]
        %v289 = vld [vmem:[%s253 + $0x28] sm:$0x1]
        %v290 = vld [vmem:[%s253 + $0x34] sm:$0x1]
        %v291 = vld [vmem:[%s253 + $0x40] sm:$0x1]
        %v292 = vld [vmem:[%s253 + $0x4c] sm:$0x1]
        %v293 = vld [vmem:[%s253 + $0x58] sm:$0x1]
        %v294 = vld [vmem:[%s253] sm:$0xe]
        %v295 = vld [vmem:[%s253 + $0xc] sm:$0xe]
        %v296 = vld [vmem:[%s253 + $0x18] sm:$0xe]
        %v297 = vld [vmem:[%s253 + $0x24] sm:$0xe]
        %v298 = vld [vmem:[%s253 + $0x30] sm:$0xe]
        %v299 = vld [vmem:[%s253 + $0x3c] sm:$0xe]
        %v300 = vld [vmem:[%s253 + $0x48] sm:$0xe]
        %v301 = vld [vmem:[%s253 + $0x54] sm:$0xe]
        %v302 = vld [vmem:[%s253 + $0x4] sm:$0x3]
        %v303 = vld [vmem:[%s253 + $0x10] sm:$0x3]
        %v304 = vld [vmem:[%s253 + $0x1c] sm:$0x3]
        %v305 = vld [vmem:[%s253 + $0x28] sm:$0x3]
        %v306 = vld [vmem:[%s253 + $0x34] sm:$0x3]
        %v307 = vld [vmem:[%s253 + $0x40] sm:$0x3]
        %v308 = vld [vmem:[%s253 + $0x4c] sm:$0x3]
        %v309 = vld [vmem:[%s253 + $0x58] sm:$0x3]
        %v310 = vld [vmem:[%s253] sm:$0xc]
        %v311 = vld [vmem:[%s253 + $0xc] sm:$0xc]
        %v312 = vld [vmem:[%s253 + $0x18] sm:$0xc]
        %v313 = vld [vmem:[%s253 + $0x24] sm:$0xc]
        %v314 = vld [vmem:[%s253 + $0x30] sm:$0xc]
        %v315 = vld [vmem:[%s253 + $0x3c] sm:$0xc]
        %v316 = vld [vmem:[%s253 + $0x48] sm:$0xc]
        %v317 = vld [vmem:[%s253 + $0x54] sm:$0xc]
        %v334 = vunpack.c.l.b16 %v278
        %v335 = vunpack.c.l.b16 %v286
        %v336 = vunpack.c.l.b16 %v279
        %v337 = vunpack.c.l.b16 %v287
        %v338 = vunpack.c.l.b16 %v280
        %v339 = vunpack.c.l.b16 %v288
        %v340 = vunpack.c.l.b16 %v281
        %v341 = vunpack.c.l.b16 %v289
        %v342 = vunpack.c.l.b16 %v282
        %v343 = vunpack.c.l.b16 %v290
        %v344 = vunpack.c.l.b16 %v283
        %v345 = vunpack.c.l.b16 %v291
        %v346 = vunpack.c.l.b16 %v284
        %v347 = vunpack.c.l.b16 %v292
        %v348 = vunpack.c.l.b16 %v285
        %v349 = vunpack.c.l.b16 %v293
        %v350 = vpack.c.b16 %v335, %v334
        %v351 = vpack.c.b16 %v337, %v336
        %v352 = vpack.c.b16 %v339, %v338
        %v353 = vpack.c.b16 %v341, %v340
        %v354 = vpack.c.b16 %v343, %v342
        %v355 = vpack.c.b16 %v345, %v344
        %v356 = vpack.c.b16 %v347, %v346
        %v357 = vpack.c.b16 %v349, %v348
        %v359 = vshrl.u32 %v350, 16
        %v361 = vshll.u32 %v350, 16
        %v363 = vrot.slane %v361, 1
        %v364 = vor.u32 %v359, %v363
        %v366 = vshrl.u32 %v351, 16
        %v368 = vshll.u32 %v351, 16
        %v370 = vrot.slane %v368, 1
        %v371 = vor.u32 %v366, %v370
        %v373 = vshrl.u32 %v352, 16
        %v375 = vshll.u32 %v352, 16
        %v377 = vrot.slane %v375, 1
        %v378 = vor.u32 %v373, %v377
        %v380 = vshrl.u32 %v353, 16
        %v382 = vshll.u32 %v353, 16
        %v384 = vrot.slane %v382, 1
        %v385 = vor.u32 %v380, %v384
        %v387 = vshrl.u32 %v354, 16
        %v389 = vshll.u32 %v354, 16
        %v391 = vrot.slane %v389, 1
        %v392 = vor.u32 %v387, %v391
        %v394 = vshrl.u32 %v355, 16
        %v396 = vshll.u32 %v355, 16
        %v398 = vrot.slane %v396, 1
        %v399 = vor.u32 %v394, %v398
        %v401 = vshrl.u32 %v356, 16
        %v403 = vshll.u32 %v356, 16
        %v405 = vrot.slane %v403, 1
        %v406 = vor.u32 %v401, %v405
        %v408 = vshrl.u32 %v357, 16
        %v410 = vshll.u32 %v357, 16
        %v412 = vrot.slane %v410, 1
        %v413 = vor.u32 %v408, %v412
        %414 = vrot.lane.b32.xlu0 %v364, 32
        %v415 = vpop.permute.xlu0 %414
        %416 = vrot.lane.b32.xlu0 %v371, 32
        %v417 = vpop.permute.xlu0 %416
        %418 = vrot.lane.b32.xlu0 %v378, 32
        %v419 = vpop.permute.xlu0 %418
        %420 = vrot.lane.b32.xlu0 %v385, 32
        %v421 = vpop.permute.xlu0 %420
        %422 = vrot.lane.b32.xlu0 %v392, 32
        %v423 = vpop.permute.xlu0 %422
        %424 = vrot.lane.b32.xlu0 %v399, 32
        %v425 = vpop.permute.xlu0 %424
        %426 = vrot.lane.b32.xlu0 %v406, 32
        %v427 = vpop.permute.xlu0 %426
        %428 = vrot.lane.b32.xlu0 %v413, 32
        %v429 = vpop.permute.xlu0 %428
        %v438 = vunpack.c.l.b16 %v294
        %v439 = vunpack.c.l.b16 %v295
        %v440 = vunpack.c.l.b16 %v296
        %v441 = vunpack.c.l.b16 %v297
        %v442 = vunpack.c.l.b16 %v298
        %v443 = vunpack.c.l.b16 %v299
        %v444 = vunpack.c.l.b16 %v300
        %v445 = vunpack.c.l.b16 %v301
        %v446 = vpack.c.b16 %v335, %v438
        %v447 = vpack.c.b16 %v337, %v439
        %v448 = vpack.c.b16 %v339, %v440
        %v449 = vpack.c.b16 %v341, %v441
        %v450 = vpack.c.b16 %v343, %v442
        %v451 = vpack.c.b16 %v345, %v443
        %v452 = vpack.c.b16 %v347, %v444
        %v453 = vpack.c.b16 %v349, %v445
        %v454 = vrot.slane %v446, 1
        %v455 = vrot.slane %v447, 1
        %v456 = vrot.slane %v448, 1
        %v457 = vrot.slane %v449, 1
        %v458 = vrot.slane %v450, 1
        %v459 = vrot.slane %v451, 1
        %v460 = vrot.slane %v452, 1
        %v461 = vrot.slane %v453, 1
        %462 = vrot.lane.b32.xlu0 %v454, 64
        %v463 = vpop.permute.xlu0 %462
        %464 = vrot.lane.b32.xlu0 %v455, 64
        %v465 = vpop.permute.xlu0 %464
        %466 = vrot.lane.b32.xlu0 %v456, 64
        %v467 = vpop.permute.xlu0 %466
        %468 = vrot.lane.b32.xlu0 %v457, 64
        %v469 = vpop.permute.xlu0 %468
        %470 = vrot.lane.b32.xlu0 %v458, 64
        %v471 = vpop.permute.xlu0 %470
        %472 = vrot.lane.b32.xlu0 %v459, 64
        %v473 = vpop.permute.xlu0 %472
        %474 = vrot.lane.b32.xlu0 %v460, 64
        %v475 = vpop.permute.xlu0 %474
        %476 = vrot.lane.b32.xlu0 %v461, 64
        %v477 = vpop.permute.xlu0 %476
        %v486 = vunpack.c.l.b16 %v302
        %v487 = vunpack.c.l.b16 %v303
        %v488 = vunpack.c.l.b16 %v304
        %v489 = vunpack.c.l.b16 %v305
        %v490 = vunpack.c.l.b16 %v306
        %v491 = vunpack.c.l.b16 %v307
        %v492 = vunpack.c.l.b16 %v308
        %v493 = vunpack.c.l.b16 %v309
        %v494 = vpack.c.b16 %v486, %v438
        %v495 = vpack.c.b16 %v487, %v439
        %v496 = vpack.c.b16 %v488, %v440
        %v497 = vpack.c.b16 %v489, %v441
        %v498 = vpack.c.b16 %v490, %v442
        %v499 = vpack.c.b16 %v491, %v443
        %v500 = vpack.c.b16 %v492, %v444
        %v501 = vpack.c.b16 %v493, %v445
        %v503 = vshrl.u32 %v494, 16
        %v505 = vrot.slane %v503, 1
        %v506 = vshll.u32 %v494, 16
        %v508 = vrot.slane %v506, 2
        %v509 = vor.u32 %v505, %v508
        %v511 = vshrl.u32 %v495, 16
        %v513 = vrot.slane %v511, 1
        %v514 = vshll.u32 %v495, 16
        %v516 = vrot.slane %v514, 2
        %v517 = vor.u32 %v513, %v516
        %v519 = vshrl.u32 %v496, 16
        %v521 = vrot.slane %v519, 1
        %v522 = vshll.u32 %v496, 16
        %v524 = vrot.slane %v522, 2
        %v525 = vor.u32 %v521, %v524
        %v527 = vshrl.u32 %v497, 16
        %v529 = vrot.slane %v527, 1
        %v530 = vshll.u32 %v497, 16
        %v532 = vrot.slane %v530, 2
        %v533 = vor.u32 %v529, %v532
        %v535 = vshrl.u32 %v498, 16
        %v537 = vrot.slane %v535, 1
        %v538 = vshll.u32 %v498, 16
        %v540 = vrot.slane %v538, 2
        %v541 = vor.u32 %v537, %v540
        %v543 = vshrl.u32 %v499, 16
        %v545 = vrot.slane %v543, 1
        %v546 = vshll.u32 %v499, 16
        %v548 = vrot.slane %v546, 2
        %v549 = vor.u32 %v545, %v548
        %v551 = vshrl.u32 %v500, 16
        %v553 = vrot.slane %v551, 1
        %v554 = vshll.u32 %v500, 16
        %v556 = vrot.slane %v554, 2
        %v557 = vor.u32 %v553, %v556
        %v559 = vshrl.u32 %v501, 16
        %v561 = vrot.slane %v559, 1
        %v562 = vshll.u32 %v501, 16
        %v564 = vrot.slane %v562, 2
        %v565 = vor.u32 %v561, %v564
        %566 = vrot.lane.b32.xlu0 %v509, 96
        %v567 = vpop.permute.xlu0 %566
        %568 = vrot.lane.b32.xlu0 %v517, 96
        %v569 = vpop.permute.xlu0 %568
        %570 = vrot.lane.b32.xlu0 %v525, 96
        %v571 = vpop.permute.xlu0 %570
        %572 = vrot.lane.b32.xlu0 %v533, 96
        %v573 = vpop.permute.xlu0 %572
        %574 = vrot.lane.b32.xlu0 %v541, 96
        %v575 = vpop.permute.xlu0 %574
        %576 = vrot.lane.b32.xlu0 %v549, 96
        %v577 = vpop.permute.xlu0 %576
        %578 = vrot.lane.b32.xlu0 %v557, 96
        %v579 = vpop.permute.xlu0 %578
        %580 = vrot.lane.b32.xlu0 %v565, 96
        %v581 = vpop.permute.xlu0 %580
        %v590 = vunpack.c.l.b16 %v310
        %v591 = vunpack.c.l.b16 %v311
        %v592 = vunpack.c.l.b16 %v312
        %v593 = vunpack.c.l.b16 %v313
        %v594 = vunpack.c.l.b16 %v314
        %v595 = vunpack.c.l.b16 %v315
        %v596 = vunpack.c.l.b16 %v316
        %v597 = vunpack.c.l.b16 %v317
        %v598 = vpack.c.b16 %v486, %v590
        %v599 = vpack.c.b16 %v487, %v591
        %v600 = vpack.c.b16 %v488, %v592
        %v601 = vpack.c.b16 %v489, %v593
        %v602 = vpack.c.b16 %v490, %v594
        %v603 = vpack.c.b16 %v491, %v595
        %v604 = vpack.c.b16 %v492, %v596
        %v605 = vpack.c.b16 %v493, %v597
        %v606 = vrot.slane %v598, 2
        %v607 = vrot.slane %v599, 2
        %v608 = vrot.slane %v600, 2
        %v609 = vrot.slane %v601, 2
        %v610 = vrot.slane %v602, 2
        %v611 = vrot.slane %v603, 2
        %v612 = vrot.slane %v604, 2
        %v613 = vrot.slane %v605, 2
        %vm614 = vcmask 261120
        %v617 = vsel %vm614, %v278, %v415
        %v620 = vsel %vm614, %v279, %v417
        %v623 = vsel %vm614, %v280, %v419
        %v626 = vsel %vm614, %v281, %v421
        %v629 = vsel %vm614, %v282, %v423
        %v632 = vsel %vm614, %v283, %v425
        %v635 = vsel %vm614, %v284, %v427
        %v638 = vsel %vm614, %v285, %v429
        %vm639 = vcmask 523264
        %v641 = vsel %vm639, %v617, %v463
        %v643 = vsel %vm639, %v620, %v465
        %v645 = vsel %vm639, %v623, %v467
        %v647 = vsel %vm639, %v626, %v469
        %v649 = vsel %vm639, %v629, %v471
        %v651 = vsel %vm639, %v632, %v473
        %v653 = vsel %vm639, %v635, %v475
        %v655 = vsel %vm639, %v638, %v477
        %vm656 = vcmask 785408
        %v658 = vsel %vm656, %v641, %v567
        %v660 = vsel %vm656, %v643, %v569
        %v662 = vsel %vm656, %v645, %v571
        %v664 = vsel %vm656, %v647, %v573
        %v666 = vsel %vm656, %v649, %v575
        %v668 = vsel %vm656, %v651, %v577
        %v670 = vsel %vm656, %v653, %v579
        %v672 = vsel %vm656, %v655, %v581
        %v674 = vlaneseq
        %v675 = vshrl.u32 %v674, 7
        %v676 = vsub.s32 0, %v675
        %v677 = vrot.slane %v276, %v676
        %v687 = vunpack.c.l.b16 %v658
        %v688 = vunpack.c.l.b16 %v606
        %v689 = vunpack.c.l.b16 %v660
        %v690 = vunpack.c.l.b16 %v607
        %v691 = vunpack.c.l.b16 %v662
        %v692 = vunpack.c.l.b16 %v608
        %v693 = vunpack.c.l.b16 %v664
        %v694 = vunpack.c.l.b16 %v609
        %v695 = vunpack.c.l.b16 %v666
        %v696 = vunpack.c.l.b16 %v610
        %v697 = vunpack.c.l.b16 %v668
        %v698 = vunpack.c.l.b16 %v611
        %v699 = vunpack.c.l.b16 %v670
        %v700 = vunpack.c.l.b16 %v612
        %v701 = vunpack.c.l.b16 %v672
        %v702 = vunpack.c.l.b16 %v613
        %v703 = vpack.c.b16 %v689, %v687
        %v704 = vpack.c.b16 %v690, %v688
        %v705 = vpack.c.b16 %v693, %v691
        %v706 = vpack.c.b16 %v694, %v692
        %v707 = vpack.c.b16 %v697, %v695
        %v708 = vpack.c.b16 %v698, %v696
        %v709 = vpack.c.b16 %v701, %v699
        %v710 = vpack.c.b16 %v702, %v700
        %v735 = vunpack.c.l.b16 %v256
        %v736 = vunpack.c.l.b16 %v257
        %v737 = vunpack.c.l.b16 %v258
        %v738 = vunpack.c.l.b16 %v259
        %v739 = vunpack.c.l.b16 %v260
        %v740 = vunpack.c.l.b16 %v261
        %v741 = vunpack.c.l.b16 %v262
        %v742 = vunpack.c.l.b16 %v263
        %v743 = vunpack.c.l.b16 %v264
        %v744 = vunpack.c.l.b16 %v265
        %v745 = vunpack.c.l.b16 %v266
        %v746 = vunpack.c.l.b16 %v267
        %v747 = vunpack.c.l.b16 %v268
        %v748 = vunpack.c.l.b16 %v269
        %v749 = vunpack.c.l.b16 %v270
        %v750 = vunpack.c.l.b16 %v271
        %v751 = vunpack.c.l.b16 %v272
        %v752 = vunpack.c.l.b16 %v273
        %v753 = vunpack.c.l.b16 %v274
        %v754 = vunpack.c.l.b16 %v275
        %v755 = vpack.c.b16 %v736, %v735
        %v756 = vpack.c.b16 %v738, %v737
        %v757 = vpack.c.b16 %v740, %v739
        %v758 = vpack.c.b16 %v742, %v741
        %v759 = vpack.c.b16 %v744, %v743
        %v760 = vpack.c.b16 %v746, %v745
        %v761 = vpack.c.b16 %v748, %v747
        %v762 = vpack.c.b16 %v750, %v749
        %v763 = vpack.c.b16 %v752, %v751
        %v764 = vpack.c.b16 %v754, %v753
        %v776 = vsel %vm614, %v704, 0
        %v779 = vsel %vm614, %v706, 0
        %v782 = vsel %vm614, %v708, 0
        %v785 = vsel %vm614, %v710, 0
        %787 = vmatprep.subr.bf16.mxu0 0
        %788 = vmatpush1.bf16.msra.mxu0 %v755
        %789 = vmatprep.subr.bf16.mxu0 0
        %790 = vmatpush1.bf16.msra.mxu0 %v756
        %791 = vmatprep.subr.bf16.mxu0 0
        %792 = vmatpush1.bf16.msra.mxu0 %v757
        %793 = vmatprep.subr.bf16.mxu0 0
        %794 = vmatpush1.bf16.msra.mxu0 %v758
        %795 = vmatprep.subr.bf16.mxu0 0
        %796 = vmatpush1.bf16.msra.mxu0 %v759
        %797 = vmatprep.subr.bf16.mxu0 0
        %798 = vmatpush1.bf16.msra.mxu0 %v760
        %799 = vmatprep.subr.bf16.mxu0 0
        %800 = vmatpush1.bf16.msra.mxu0 %v761
        %801 = vmatprep.subr.bf16.mxu0 0
        %802 = vmatpush1.bf16.msra.mxu0 %v762
        %803 = vmatprep.subr.bf16.mxu0 0
        %804 = vmatpush1.bf16.msra.mxu0 %v763
        %805 = vmatprep.subr.bf16.mxu0 0
        %806 = vmatpush1.bf16.msra.mxu0 %v764
        %807 = vmatprep.subr.bf16.mxu0 0
        %808 = vmatpush1.bf16.msra.mxu0 0
        %809 = vmatprep.subr.bf16.mxu0 0
        %810 = vmatpush1.bf16.msra.mxu0 0
        %811 = vmatprep.subr.bf16.mxu0 0
        %812 = vmatpush1.bf16.msra.mxu0 0
        %813 = vmatprep.subr.bf16.mxu0 0
        %814 = vmatpush1.bf16.msra.mxu0 0
        %815 = vmatprep.subr.bf16.mxu0 0
        %816 = vmatpush1.bf16.msra.mxu0 0
        %817 = vmatprep.subr.bf16.mxu0 0
        %818 = vmatpush1.bf16.msra.mxu0 0
        %819 = vmatprep.mubr.bf16.mxu0 %v776
        %820 = vmatmul.mubr.bf16.gmra.mrb[0].mxu0 %v703
        %v821 = vpop.f32.mrb[0].mxu0
        %v822 = vadd.f32 %v677, %v821
        %v823 = vpop.f32.mrb[0].mxu0
        %v824 = vpop.f32.mrb[0].mxu0
        %v825 = vadd.f32 %v677, %v824
        %v826 = vpop.f32.mrb[0].mxu0
        %827 = vmatprep.mubr.bf16.mxu0 %v779
        %828 = vmatmul.mubr.bf16.gmra.mrb[0].mxu0 %v705
        %v829 = vpop.f32.mrb[0].mxu0
        %v830 = vadd.f32 %v677, %v829
        %v831 = vpop.f32.mrb[0].mxu0
        %v832 = vpop.f32.mrb[0].mxu0
        %v833 = vadd.f32 %v677, %v832
        %v834 = vpop.f32.mrb[0].mxu0
        %835 = vmatprep.mubr.bf16.mxu0 %v782
        %836 = vmatmul.mubr.bf16.gmra.mrb[0].mxu0 %v707
        %v837 = vpop.f32.mrb[0].mxu0
        %v838 = vadd.f32 %v677, %v837
        %v839 = vpop.f32.mrb[0].mxu0
        %v840 = vpop.f32.mrb[0].mxu0
        %v841 = vadd.f32 %v677, %v840
        %v842 = vpop.f32.mrb[0].mxu0
        %843 = vmatprep.mubr.bf16.mxu0 %v785
        %844 = vmatmul.mubr.bf16.gmra.mrb[0].mxu0 %v709
        %v845 = vpop.f32.mrb[0].mxu0
        %v846 = vadd.f32 %v677, %v845
        %v847 = vpop.f32.mrb[0].mxu0
        %v848 = vpop.f32.mrb[0].mxu0
        %v849 = vadd.f32 %v677, %v848
        %v850 = vpop.f32.mrb[0].mxu0
        %851 = vdwg.mxu0
        %v852 = vmax.f32 %v822, 0.0
        %v853 = vmax.f32 %v825, 0.0
        %v854 = vmax.f32 %v830, 0.0
        %v855 = vmax.f32 %v833, 0.0
        %v856 = vmax.f32 %v838, 0.0
        %v857 = vmax.f32 %v841, 0.0
        %v858 = vmax.f32 %v846, 0.0
        %v859 = vmax.f32 %v849, 0.0
        %v860 = vrot.slane %v852, 4
        %v861 = vmax.f32 %v852, %v860
        %v862 = vrot.slane %v861, 2
        %v863 = vmax.f32 %v861, %v862
        %v864 = vrot.slane %v863, 1
        %v865 = vmax.f32 %v863, %v864
        %v866 = vrot.slane %v853, 4
        %v867 = vmax.f32 %v853, %v866
        %v868 = vrot.slane %v867, 2
        %v869 = vmax.f32 %v867, %v868
        %v870 = vrot.slane %v869, 1
        %v871 = vmax.f32 %v869, %v870
        %v872 = vrot.slane %v854, 4
        %v873 = vmax.f32 %v854, %v872
        %v874 = vrot.slane %v873, 2
        %v875 = vmax.f32 %v873, %v874
        %v876 = vrot.slane %v875, 1
        %v877 = vmax.f32 %v875, %v876
        %v878 = vrot.slane %v855, 4
        %v879 = vmax.f32 %v855, %v878
        %v880 = vrot.slane %v879, 2
        %v881 = vmax.f32 %v879, %v880
        %v882 = vrot.slane %v881, 1
        %v883 = vmax.f32 %v881, %v882
        %v884 = vrot.slane %v856, 4
        %v885 = vmax.f32 %v856, %v884
        %v886 = vrot.slane %v885, 2
        %v887 = vmax.f32 %v885, %v886
        %v888 = vrot.slane %v887, 1
        %v889 = vmax.f32 %v887, %v888
        %v890 = vrot.slane %v857, 4
        %v891 = vmax.f32 %v857, %v890
        %v892 = vrot.slane %v891, 2
        %v893 = vmax.f32 %v891, %v892
        %v894 = vrot.slane %v893, 1
        %v895 = vmax.f32 %v893, %v894
        %v896 = vrot.slane %v858, 4
        %v897 = vmax.f32 %v858, %v896
        %v898 = vrot.slane %v897, 2
        %v899 = vmax.f32 %v897, %v898
        %v900 = vrot.slane %v899, 1
        %v901 = vmax.f32 %v899, %v900
        %v902 = vrot.slane %v859, 4
        %v903 = vmax.f32 %v859, %v902
        %v904 = vrot.slane %v903, 2
        %v905 = vmax.f32 %v903, %v904
        %v906 = vrot.slane %v905, 1
        %v907 = vmax.f32 %v905, %v906
        %v908 = vld [vmem:[%s253 + $0x4] sm:$0xf]
        %v909 = vld [vmem:[%s253 + $0x10] sm:$0xf]
        %v910 = vld [vmem:[%s253 + $0x1c] sm:$0xf]
        %v911 = vld [vmem:[%s253 + $0x28] sm:$0xf]
        %v912 = vld [vmem:[%s253 + $0x34] sm:$0xf]
        %v913 = vld [vmem:[%s253 + $0x40] sm:$0xf]
        %v914 = vld [vmem:[%s253 + $0x4c] sm:$0xf]
        %v915 = vld [vmem:[%s253 + $0x58] sm:$0xf]
        %v916 = vld [vmem:[%s253 + $0x8] sm:$0x1]
        %v917 = vld [vmem:[%s253 + $0x14] sm:$0x1]
        %v918 = vld [vmem:[%s253 + $0x20] sm:$0x1]
        %v919 = vld [vmem:[%s253 + $0x2c] sm:$0x1]
        %v920 = vld [vmem:[%s253 + $0x38] sm:$0x1]
        %v921 = vld [vmem:[%s253 + $0x44] sm:$0x1]
        %v922 = vld [vmem:[%s253 + $0x50] sm:$0x1]
        %v923 = vld [vmem:[%s253 + $0x5c] sm:$0x1]
        %v924 = vld [vmem:[%s253 + $0x4] sm:$0xe]
        %v925 = vld [vmem:[%s253 + $0x10] sm:$0xe]
        %v926 = vld [vmem:[%s253 + $0x1c] sm:$0xe]
        %v927 = vld [vmem:[%s253 + $0x28] sm:$0xe]
        %v928 = vld [vmem:[%s253 + $0x34] sm:$0xe]
        %v929 = vld [vmem:[%s253 + $0x40] sm:$0xe]
        %v930 = vld [vmem:[%s253 + $0x4c] sm:$0xe]
        %v931 = vld [vmem:[%s253 + $0x58] sm:$0xe]
        %v932 = vld [vmem:[%s253 + $0x8] sm:$0x3]
        %v933 = vld [vmem:[%s253 + $0x14] sm:$0x3]
        %v934 = vld [vmem:[%s253 + $0x20] sm:$0x3]
        %v935 = vld [vmem:[%s253 + $0x2c] sm:$0x3]
        %v936 = vld [vmem:[%s253 + $0x38] sm:$0x3]
        %v937 = vld [vmem:[%s253 + $0x44] sm:$0x3]
        %v938 = vld [vmem:[%s253 + $0x50] sm:$0x3]
        %v939 = vld [vmem:[%s253 + $0x5c] sm:$0x3]
        %v940 = vld [vmem:[%s253 + $0x4] sm:$0xc]
        %v941 = vld [vmem:[%s253 + $0x10] sm:$0xc]
        %v942 = vld [vmem:[%s253 + $0x1c] sm:$0xc]
        %v943 = vld [vmem:[%s253 + $0x28] sm:$0xc]
        %v944 = vld [vmem:[%s253 + $0x34] sm:$0xc]
        %v945 = vld [vmem:[%s253 + $0x40] sm:$0xc]
        %v946 = vld [vmem:[%s253 + $0x4c] sm:$0xc]
        %v947 = vld [vmem:[%s253 + $0x58] sm:$0xc]
        %v964 = vunpack.c.l.b16 %v908
        %v965 = vunpack.c.l.b16 %v916
        %v966 = vunpack.c.l.b16 %v909
        %v967 = vunpack.c.l.b16 %v917
        %v968 = vunpack.c.l.b16 %v910
        %v969 = vunpack.c.l.b16 %v918
        %v970 = vunpack.c.l.b16 %v911
        %v971 = vunpack.c.l.b16 %v919
        %v972 = vunpack.c.l.b16 %v912
        %v973 = vunpack.c.l.b16 %v920
        %v974 = vunpack.c.l.b16 %v913
        %v975 = vunpack.c.l.b16 %v921
        %v976 = vunpack.c.l.b16 %v914
        %v977 = vunpack.c.l.b16 %v922
        %v978 = vunpack.c.l.b16 %v915
        %v979 = vunpack.c.l.b16 %v923
        %v980 = vpack.c.b16 %v965, %v964
        %v981 = vpack.c.b16 %v967, %v966
        %v982 = vpack.c.b16 %v969, %v968
        %v983 = vpack.c.b16 %v971, %v970
        %v984 = vpack.c.b16 %v973, %v972
        %v985 = vpack.c.b16 %v975, %v974
        %v986 = vpack.c.b16 %v977, %v976
        %v987 = vpack.c.b16 %v979, %v978
        %v989 = vshrl.u32 %v980, 16
        %v991 = vshll.u32 %v980, 16
        %v993 = vrot.slane %v991, 1
        %v994 = vor.u32 %v989, %v993
        %v996 = vshrl.u32 %v981, 16
        %v998 = vshll.u32 %v981, 16
        %v1000 = vrot.slane %v998, 1
        %v1001 = vor.u32 %v996, %v1000
        %v1003 = vshrl.u32 %v982, 16
        %v1005 = vshll.u32 %v982, 16
        %v1007 = vrot.slane %v1005, 1
        %v1008 = vor.u32 %v1003, %v1007
        %v1010 = vshrl.u32 %v983, 16
        %v1012 = vshll.u32 %v983, 16
        %v1014 = vrot.slane %v1012, 1
        %v1015 = vor.u32 %v1010, %v1014
        %v1017 = vshrl.u32 %v984, 16
        %v1019 = vshll.u32 %v984, 16
        %v1021 = vrot.slane %v1019, 1
        %v1022 = vor.u32 %v1017, %v1021
        %v1024 = vshrl.u32 %v985, 16
        %v1026 = vshll.u32 %v985, 16
        %v1028 = vrot.slane %v1026, 1
        %v1029 = vor.u32 %v1024, %v1028
        %v1031 = vshrl.u32 %v986, 16
        %v1033 = vshll.u32 %v986, 16
        %v1035 = vrot.slane %v1033, 1
        %v1036 = vor.u32 %v1031, %v1035
        %v1038 = vshrl.u32 %v987, 16
        %v1040 = vshll.u32 %v987, 16
        %v1042 = vrot.slane %v1040, 1
        %v1043 = vor.u32 %v1038, %v1042
        %1044 = vrot.lane.b32.xlu0 %v994, 32
        %v1045 = vpop.permute.xlu0 %1044
        %1046 = vrot.lane.b32.xlu0 %v1001, 32
        %v1047 = vpop.permute.xlu0 %1046
        %1048 = vrot.lane.b32.xlu0 %v1008, 32
        %v1049 = vpop.permute.xlu0 %1048
        %1050 = vrot.lane.b32.xlu0 %v1015, 32
        %v1051 = vpop.permute.xlu0 %1050
        %1052 = vrot.lane.b32.xlu0 %v1022, 32
        %v1053 = vpop.permute.xlu0 %1052
        %1054 = vrot.lane.b32.xlu0 %v1029, 32
        %v1055 = vpop.permute.xlu0 %1054
        %1056 = vrot.lane.b32.xlu0 %v1036, 32
        %v1057 = vpop.permute.xlu0 %1056
        %1058 = vrot.lane.b32.xlu0 %v1043, 32
        %v1059 = vpop.permute.xlu0 %1058
        %v1068 = vunpack.c.l.b16 %v924
        %v1069 = vunpack.c.l.b16 %v925
        %v1070 = vunpack.c.l.b16 %v926
        %v1071 = vunpack.c.l.b16 %v927
        %v1072 = vunpack.c.l.b16 %v928
        %v1073 = vunpack.c.l.b16 %v929
        %v1074 = vunpack.c.l.b16 %v930
        %v1075 = vunpack.c.l.b16 %v931
        %v1076 = vpack.c.b16 %v965, %v1068
        %v1077 = vpack.c.b16 %v967, %v1069
        %v1078 = vpack.c.b16 %v969, %v1070
        %v1079 = vpack.c.b16 %v971, %v1071
        %v1080 = vpack.c.b16 %v973, %v1072
        %v1081 = vpack.c.b16 %v975, %v1073
        %v1082 = vpack.c.b16 %v977, %v1074
        %v1083 = vpack.c.b16 %v979, %v1075
        %v1084 = vrot.slane %v1076, 1
        %v1085 = vrot.slane %v1077, 1
        %v1086 = vrot.slane %v1078, 1
        %v1087 = vrot.slane %v1079, 1
        %v1088 = vrot.slane %v1080, 1
        %v1089 = vrot.slane %v1081, 1
        %v1090 = vrot.slane %v1082, 1
        %v1091 = vrot.slane %v1083, 1
        %1092 = vrot.lane.b32.xlu0 %v1084, 64
        %v1093 = vpop.permute.xlu0 %1092
        %1094 = vrot.lane.b32.xlu0 %v1085, 64
        %v1095 = vpop.permute.xlu0 %1094
        %1096 = vrot.lane.b32.xlu0 %v1086, 64
        %v1097 = vpop.permute.xlu0 %1096
        %1098 = vrot.lane.b32.xlu0 %v1087, 64
        %v1099 = vpop.permute.xlu0 %1098
        %1100 = vrot.lane.b32.xlu0 %v1088, 64
        %v1101 = vpop.permute.xlu0 %1100
        %1102 = vrot.lane.b32.xlu0 %v1089, 64
        %v1103 = vpop.permute.xlu0 %1102
        %1104 = vrot.lane.b32.xlu0 %v1090, 64
        %v1105 = vpop.permute.xlu0 %1104
        %1106 = vrot.lane.b32.xlu0 %v1091, 64
        %v1107 = vpop.permute.xlu0 %1106
        %v1116 = vunpack.c.l.b16 %v932
        %v1117 = vunpack.c.l.b16 %v933
        %v1118 = vunpack.c.l.b16 %v934
        %v1119 = vunpack.c.l.b16 %v935
        %v1120 = vunpack.c.l.b16 %v936
        %v1121 = vunpack.c.l.b16 %v937
        %v1122 = vunpack.c.l.b16 %v938
        %v1123 = vunpack.c.l.b16 %v939
        %v1124 = vpack.c.b16 %v1116, %v1068
        %v1125 = vpack.c.b16 %v1117, %v1069
        %v1126 = vpack.c.b16 %v1118, %v1070
        %v1127 = vpack.c.b16 %v1119, %v1071
        %v1128 = vpack.c.b16 %v1120, %v1072
        %v1129 = vpack.c.b16 %v1121, %v1073
        %v1130 = vpack.c.b16 %v1122, %v1074
        %v1131 = vpack.c.b16 %v1123, %v1075
        %v1133 = vshrl.u32 %v1124, 16
        %v1135 = vrot.slane %v1133, 1
        %v1136 = vshll.u32 %v1124, 16
        %v1138 = vrot.slane %v1136, 2
        %v1139 = vor.u32 %v1135, %v1138
        %v1141 = vshrl.u32 %v1125, 16
        %v1143 = vrot.slane %v1141, 1
        %v1144 = vshll.u32 %v1125, 16
        %v1146 = vrot.slane %v1144, 2
        %v1147 = vor.u32 %v1143, %v1146
        %v1149 = vshrl.u32 %v1126, 16
        %v1151 = vrot.slane %v1149, 1
        %v1152 = vshll.u32 %v1126, 16
        %v1154 = vrot.slane %v1152, 2
        %v1155 = vor.u32 %v1151, %v1154
        %v1157 = vshrl.u32 %v1127, 16
        %v1159 = vrot.slane %v1157, 1
        %v1160 = vshll.u32 %v1127, 16
        %v1162 = vrot.slane %v1160, 2
        %v1163 = vor.u32 %v1159, %v1162
        %v1165 = vshrl.u32 %v1128, 16
        %v1167 = vrot.slane %v1165, 1
        %v1168 = vshll.u32 %v1128, 16
        %v1170 = vrot.slane %v1168, 2
        %v1171 = vor.u32 %v1167, %v1170
        %v1173 = vshrl.u32 %v1129, 16
        %v1175 = vrot.slane %v1173, 1
        %v1176 = vshll.u32 %v1129, 16
        %v1178 = vrot.slane %v1176, 2
        %v1179 = vor.u32 %v1175, %v1178
        %v1181 = vshrl.u32 %v1130, 16
        %v1183 = vrot.slane %v1181, 1
        %v1184 = vshll.u32 %v1130, 16
        %v1186 = vrot.slane %v1184, 2
        %v1187 = vor.u32 %v1183, %v1186
        %v1189 = vshrl.u32 %v1131, 16
        %v1191 = vrot.slane %v1189, 1
        %v1192 = vshll.u32 %v1131, 16
        %v1194 = vrot.slane %v1192, 2
        %v1195 = vor.u32 %v1191, %v1194
        %1196 = vrot.lane.b32.xlu0 %v1139, 96
        %v1197 = vpop.permute.xlu0 %1196
        %1198 = vrot.lane.b32.xlu0 %v1147, 96
        %v1199 = vpop.permute.xlu0 %1198
        %1200 = vrot.lane.b32.xlu0 %v1155, 96
        %v1201 = vpop.permute.xlu0 %1200
        %1202 = vrot.lane.b32.xlu0 %v1163, 96
        %v1203 = vpop.permute.xlu0 %1202
        %1204 = vrot.lane.b32.xlu0 %v1171, 96
        %v1205 = vpop.permute.xlu0 %1204
        %1206 = vrot.lane.b32.xlu0 %v1179, 96
        %v1207 = vpop.permute.xlu0 %1206
        %1208 = vrot.lane.b32.xlu0 %v1187, 96
        %v1209 = vpop.permute.xlu0 %1208
        %1210 = vrot.lane.b32.xlu0 %v1195, 96
        %v1211 = vpop.permute.xlu0 %1210
        %v1220 = vunpack.c.l.b16 %v940
        %v1221 = vunpack.c.l.b16 %v941
        %v1222 = vunpack.c.l.b16 %v942
        %v1223 = vunpack.c.l.b16 %v943
        %v1224 = vunpack.c.l.b16 %v944
        %v1225 = vunpack.c.l.b16 %v945
        %v1226 = vunpack.c.l.b16 %v946
        %v1227 = vunpack.c.l.b16 %v947
        %v1228 = vpack.c.b16 %v1116, %v1220
        %v1229 = vpack.c.b16 %v1117, %v1221
        %v1230 = vpack.c.b16 %v1118, %v1222
        %v1231 = vpack.c.b16 %v1119, %v1223
        %v1232 = vpack.c.b16 %v1120, %v1224
        %v1233 = vpack.c.b16 %v1121, %v1225
        %v1234 = vpack.c.b16 %v1122, %v1226
        %v1235 = vpack.c.b16 %v1123, %v1227
        %v1236 = vrot.slane %v1228, 2
        %v1237 = vrot.slane %v1229, 2
        %v1238 = vrot.slane %v1230, 2
        %v1239 = vrot.slane %v1231, 2
        %v1240 = vrot.slane %v1232, 2
        %v1241 = vrot.slane %v1233, 2
        %v1242 = vrot.slane %v1234, 2
        %v1243 = vrot.slane %v1235, 2
        %v1246 = vsel %vm614, %v908, %v1045
        %v1249 = vsel %vm614, %v909, %v1047
        %v1252 = vsel %vm614, %v910, %v1049
        %v1255 = vsel %vm614, %v911, %v1051
        %v1258 = vsel %vm614, %v912, %v1053
        %v1261 = vsel %vm614, %v913, %v1055
        %v1264 = vsel %vm614, %v914, %v1057
        %v1267 = vsel %vm614, %v915, %v1059
        %v1269 = vsel %vm639, %v1246, %v1093
        %v1271 = vsel %vm639, %v1249, %v1095
        %v1273 = vsel %vm639, %v1252, %v1097
        %v1275 = vsel %vm639, %v1255, %v1099
        %v1277 = vsel %vm639, %v1258, %v1101
        %v1279 = vsel %vm639, %v1261, %v1103
        %v1281 = vsel %vm639, %v1264, %v1105
        %v1283 = vsel %vm639, %v1267, %v1107
        %v1285 = vsel %vm656, %v1269, %v1197
        %v1287 = vsel %vm656, %v1271, %v1199
        %v1289 = vsel %vm656, %v1273, %v1201
        %v1291 = vsel %vm656, %v1275, %v1203
        %v1293 = vsel %vm656, %v1277, %v1205
        %v1295 = vsel %vm656, %v1279, %v1207
        %v1297 = vsel %vm656, %v1281, %v1209
        %v1299 = vsel %vm656, %v1283, %v1211
        %v1308 = vunpack.c.l.b16 %v1285
        %v1309 = vunpack.c.l.b16 %v1236
        %v1310 = vunpack.c.l.b16 %v1287
        %v1311 = vunpack.c.l.b16 %v1237
        %v1312 = vunpack.c.l.b16 %v1289
        %v1313 = vunpack.c.l.b16 %v1238
        %v1314 = vunpack.c.l.b16 %v1291
        %v1315 = vunpack.c.l.b16 %v1239
        %v1316 = vunpack.c.l.b16 %v1293
        %v1317 = vunpack.c.l.b16 %v1240
        %v1318 = vunpack.c.l.b16 %v1295
        %v1319 = vunpack.c.l.b16 %v1241
        %v1320 = vunpack.c.l.b16 %v1297
        %v1321 = vunpack.c.l.b16 %v1242
        %v1322 = vunpack.c.l.b16 %v1299
        %v1323 = vunpack.c.l.b16 %v1243
        %v1324 = vpack.c.b16 %v1310, %v1308
        %v1325 = vpack.c.b16 %v1311, %v1309
        %v1326 = vpack.c.b16 %v1314, %v1312
        %v1327 = vpack.c.b16 %v1315, %v1313
        %v1328 = vpack.c.b16 %v1318, %v1316
        %v1329 = vpack.c.b16 %v1319, %v1317
        %v1330 = vpack.c.b16 %v1322, %v1320
        %v1331 = vpack.c.b16 %v1323, %v1321
        %v1337 = vsel %vm614, %v1325, 0
        %v1340 = vsel %vm614, %v1327, 0
        %v1343 = vsel %vm614, %v1329, 0
        %v1346 = vsel %vm614, %v1331, 0
        %1348 = vmatprep.subr.bf16.mxu0 0
        %1349 = vmatpush1.bf16.msra.mxu0 %v755
        %1350 = vmatprep.subr.bf16.mxu0 0
        %1351 = vmatpush1.bf16.msra.mxu0 %v756
        %1352 = vmatprep.subr.bf16.mxu0 0
        %1353 = vmatpush1.bf16.msra.mxu0 %v757
        %1354 = vmatprep.subr.bf16.mxu0 0
        %1355 = vmatpush1.bf16.msra.mxu0 %v758
        %1356 = vmatprep.subr.bf16.mxu0 0
        %1357 = vmatpush1.bf16.msra.mxu0 %v759
        %1358 = vmatprep.subr.bf16.mxu0 0
        %1359 = vmatpush1.bf16.msra.mxu0 %v760
        %1360 = vmatprep.subr.bf16.mxu0 0
        %1361 = vmatpush1.bf16.msra.mxu0 %v761
        %1362 = vmatprep.subr.bf16.mxu0 0
        %1363 = vmatpush1.bf16.msra.mxu0 %v762
        %1364 = vmatprep.subr.bf16.mxu0 0
        %1365 = vmatpush1.bf16.msra.mxu0 %v763
        %1366 = vmatprep.subr.bf16.mxu0 0
        %1367 = vmatpush1.bf16.msra.mxu0 %v764
        %1368 = vmatprep.subr.bf16.mxu0 0
        %1369 = vmatpush1.bf16.msra.mxu0 0
        %1370 = vmatprep.subr.bf16.mxu0 0
        %1371 = vmatpush1.bf16.msra.mxu0 0
        %1372 = vmatprep.subr.bf16.mxu0 0
        %1373 = vmatpush1.bf16.msra.mxu0 0
        %1374 = vmatprep.subr.bf16.mxu0 0
        %1375 = vmatpush1.bf16.msra.mxu0 0
        %1376 = vmatprep.subr.bf16.mxu0 0
        %1377 = vmatpush1.bf16.msra.mxu0 0
        %1378 = vmatprep.subr.bf16.mxu0 0
        %1379 = vmatpush1.bf16.msra.mxu0 0
        %1380 = vmatprep.mubr.bf16.mxu0 %v1337
        %1381 = vmatmul.mubr.bf16.gmra.mrb[0].mxu0 %v1324
        %v1382 = vpop.f32.mrb[0].mxu0
        %v1383 = vadd.f32 %v677, %v1382
        %v1384 = vpop.f32.mrb[0].mxu0
        %v1385 = vpop.f32.mrb[0].mxu0
        %v1386 = vadd.f32 %v677, %v1385
        %v1387 = vpop.f32.mrb[0].mxu0
        %1388 = vmatprep.mubr.bf16.mxu0 %v1340
        %1389 = vmatmul.mubr.bf16.gmra.mrb[0].mxu0 %v1326
        %v1390 = vpop.f32.mrb[0].mxu0
        %v1391 = vadd.f32 %v677, %v1390
        %v1392 = vpop.f32.mrb[0].mxu0
        %v1393 = vpop.f32.mrb[0].mxu0
        %v1394 = vadd.f32 %v677, %v1393
        %v1395 = vpop.f32.mrb[0].mxu0
        %1396 = vmatprep.mubr.bf16.mxu0 %v1343
        %1397 = vmatmul.mubr.bf16.gmra.mrb[0].mxu0 %v1328
        %v1398 = vpop.f32.mrb[0].mxu0
        %v1399 = vadd.f32 %v677, %v1398
        %v1400 = vpop.f32.mrb[0].mxu0
        %v1401 = vpop.f32.mrb[0].mxu0
        %v1402 = vadd.f32 %v677, %v1401
        %v1403 = vpop.f32.mrb[0].mxu0
        %1404 = vmatprep.mubr.bf16.mxu0 %v1346
        %1405 = vmatmul.mubr.bf16.gmra.mrb[0].mxu0 %v1330
        %v1406 = vpop.f32.mrb[0].mxu0
        %v1407 = vadd.f32 %v677, %v1406
        %v1408 = vpop.f32.mrb[0].mxu0
        %v1409 = vpop.f32.mrb[0].mxu0
        %v1410 = vadd.f32 %v677, %v1409
        %v1411 = vpop.f32.mrb[0].mxu0
        %1412 = vdwg.mxu0
        %v1413 = vmax.f32 %v1383, 0.0
        %v1414 = vmax.f32 %v1386, 0.0
        %v1415 = vmax.f32 %v1391, 0.0
        %v1416 = vmax.f32 %v1394, 0.0
        %v1417 = vmax.f32 %v1399, 0.0
        %v1418 = vmax.f32 %v1402, 0.0
        %v1419 = vmax.f32 %v1407, 0.0
        %v1420 = vmax.f32 %v1410, 0.0
        %v1421 = vlaneseq
        %v1422 = vshrl.u32 %v1421, 7
        %v1423 = vadd.s32 %v1422, 8
        %v1424 = vlaneseq
        %v1425 = vshrl.u32 %v1424, 7
        %v1426 = vsub.s32 0, %v1425
        %v1427 = vrot.slane %v277, %v1426
        %vm1428 = vcmp.lt.s32.totalorder %v1423, %v1427
        %v1429 = vsel %vm1428, 1, 0
        %v1430 = vcvt.s32.f32 %v1429
        %v1431 = vmul.f32 %v1413, %v1430
        %v1432 = vmul.f32 %v1414, %v1430
        %v1433 = vmul.f32 %v1415, %v1430
        %v1434 = vmul.f32 %v1416, %v1430
        %v1435 = vmul.f32 %v1417, %v1430
        %v1436 = vmul.f32 %v1418, %v1430
        %v1437 = vmul.f32 %v1419, %v1430
        %v1438 = vmul.f32 %v1420, %v1430
        %v1439 = vrot.slane %v1431, 4
        %v1440 = vmax.f32 %v1431, %v1439
        %v1441 = vrot.slane %v1440, 2
        %v1442 = vmax.f32 %v1440, %v1441
        %v1443 = vrot.slane %v1442, 1
        %v1444 = vmax.f32 %v1442, %v1443
        %v1445 = vrot.slane %v1432, 4
        %v1446 = vmax.f32 %v1432, %v1445
        %v1447 = vrot.slane %v1446, 2
        %v1448 = vmax.f32 %v1446, %v1447
        %v1449 = vrot.slane %v1448, 1
        %v1450 = vmax.f32 %v1448, %v1449
        %v1451 = vrot.slane %v1433, 4
        %v1452 = vmax.f32 %v1433, %v1451
        %v1453 = vrot.slane %v1452, 2
        %v1454 = vmax.f32 %v1452, %v1453
        %v1455 = vrot.slane %v1454, 1
        %v1456 = vmax.f32 %v1454, %v1455
        %v1457 = vrot.slane %v1434, 4
        %v1458 = vmax.f32 %v1434, %v1457
        %v1459 = vrot.slane %v1458, 2
        %v1460 = vmax.f32 %v1458, %v1459
        %v1461 = vrot.slane %v1460, 1
        %v1462 = vmax.f32 %v1460, %v1461
        %v1463 = vrot.slane %v1435, 4
        %v1464 = vmax.f32 %v1435, %v1463
        %v1465 = vrot.slane %v1464, 2
        %v1466 = vmax.f32 %v1464, %v1465
        %v1467 = vrot.slane %v1466, 1
        %v1468 = vmax.f32 %v1466, %v1467
        %v1469 = vrot.slane %v1436, 4
        %v1470 = vmax.f32 %v1436, %v1469
        %v1471 = vrot.slane %v1470, 2
        %v1472 = vmax.f32 %v1470, %v1471
        %v1473 = vrot.slane %v1472, 1
        %v1474 = vmax.f32 %v1472, %v1473
        %v1475 = vrot.slane %v1437, 4
        %v1476 = vmax.f32 %v1437, %v1475
        %v1477 = vrot.slane %v1476, 2
        %v1478 = vmax.f32 %v1476, %v1477
        %v1479 = vrot.slane %v1478, 1
        %v1480 = vmax.f32 %v1478, %v1479
        %v1481 = vrot.slane %v1438, 4
        %v1482 = vmax.f32 %v1438, %v1481
        %v1483 = vrot.slane %v1482, 2
        %v1484 = vmax.f32 %v1482, %v1483
        %v1485 = vrot.slane %v1484, 1
        %v1486 = vmax.f32 %v1484, %v1485
        %v1487 = vmax.f32 %v865, %v1444
        %v1488 = vmax.f32 %v871, %v1450
        %v1489 = vmax.f32 %v877, %v1456
        %v1490 = vmax.f32 %v883, %v1462
        %v1491 = vmax.f32 %v889, %v1468
        %v1492 = vmax.f32 %v895, %v1474
        %v1493 = vmax.f32 %v901, %v1480
        %v1494 = vmax.f32 %v907, %v1486
        %v1495 = vpack.c.bf16 %v1487, %v1487
        %v1496 = vpack.c.bf16 %v1488, %v1488
        %v1497 = vpack.c.bf16 %v1489, %v1489
        %v1498 = vpack.c.bf16 %v1490, %v1490
        %v1499 = vpack.c.bf16 %v1491, %v1491
        %v1500 = vpack.c.bf16 %v1492, %v1492
        %v1501 = vpack.c.bf16 %v1493, %v1493
        %v1502 = vpack.c.bf16 %v1494, %v1494
        %v1503 = vld [vmem:[%s4] sm:$0xf]
        %v1504 = vld [vmem:[%s4 + $0x4] sm:$0xf]
        %v1505 = vld [vmem:[%s4 + $0x8] sm:$0xf]
        %v1506 = vld [vmem:[%s4 + $0xc] sm:$0xf]
        %v1507 = vld [vmem:[%s4 + $0x10] sm:$0xf]
        %v1508 = vld [vmem:[%s4 + $0x14] sm:$0xf]
        %v1509 = vld [vmem:[%s4 + $0x18] sm:$0xf]
        %v1510 = vld [vmem:[%s4 + $0x1c] sm:$0xf]
        %v1511 = vld [vmem:[%s4 + $0x20] sm:$0xf]
        %v1512 = vld [vmem:[%s4 + $0x24] sm:$0xf]
        %v1513 = vld [vmem:[%s4 + $0x28] sm:$0xf]
        %v1514 = vld [vmem:[%s4 + $0x2c] sm:$0xf]
        %v1515 = vld [vmem:[%s4 + $0x30] sm:$0xf]
        %v1516 = vld [vmem:[%s4 + $0x34] sm:$0xf]
        %v1517 = vld [vmem:[%s4 + $0x38] sm:$0xf]
        %v1518 = vld [vmem:[%s4 + $0x3c] sm:$0xf]
        %v1519 = vld [vmem:[%s5] sm:$0x1]
        %v1521 = vlaneseq
        %v1522 = vshrl.u32 %v1521, 7
        %v1523 = vsub.s32 0, %v1522
        %v1524 = vrot.slane %v1519, %v1523
        %v1534 = vunpack.c.l.b16 %v1495
        %v1535 = vunpack.c.l.b16 %v1496
        %v1536 = vunpack.c.l.b16 %v1497
        %v1537 = vunpack.c.l.b16 %v1498
        %v1538 = vunpack.c.l.b16 %v1499
        %v1539 = vunpack.c.l.b16 %v1500
        %v1540 = vunpack.c.l.b16 %v1501
        %v1541 = vunpack.c.l.b16 %v1502
        %vm1542 = vcmask 1041409
        %v1543 = vsel %vm1542, %v1535, %v1534
        %vm1544 = vcmask 1042434
        %v1545 = vsel %vm1544, %v1536, %v1543
        %vm1546 = vcmask 1043459
        %v1547 = vsel %vm1546, %v1537, %v1545
        %vm1548 = vcmask 1044484
        %v1549 = vsel %vm1548, %v1538, %v1547
        %vm1550 = vcmask 1045509
        %v1551 = vsel %vm1550, %v1539, %v1549
        %vm1552 = vcmask 1046534
        %v1553 = vsel %vm1552, %v1540, %v1551
        %vm1554 = vcmask 1047559
        %v1555 = vsel %vm1554, %v1541, %v1553
        %v1556 = vpack.c.b16 %v1555, %v1555
        %v1574 = vunpack.c.l.b16 %v1503
        %v1575 = vunpack.c.l.b16 %v1504
        %v1576 = vunpack.c.l.b16 %v1505
        %v1577 = vunpack.c.l.b16 %v1506
        %v1578 = vunpack.c.l.b16 %v1507
        %v1579 = vunpack.c.l.b16 %v1508
        %v1580 = vunpack.c.l.b16 %v1509
        %v1581 = vunpack.c.l.b16 %v1510
        %v1582 = vunpack.c.l.b16 %v1511
        %v1583 = vunpack.c.l.b16 %v1512
        %v1584 = vunpack.c.l.b16 %v1513
        %v1585 = vunpack.c.l.b16 %v1514
        %v1586 = vunpack.c.l.b16 %v1515
        %v1587 = vunpack.c.l.b16 %v1516
        %v1588 = vunpack.c.l.b16 %v1517
        %v1589 = vunpack.c.l.b16 %v1518
        %v1590 = vpack.c.b16 %v1575, %v1574
        %v1591 = vpack.c.b16 %v1577, %v1576
        %v1592 = vpack.c.b16 %v1579, %v1578
        %v1593 = vpack.c.b16 %v1581, %v1580
        %v1594 = vpack.c.b16 %v1583, %v1582
        %v1595 = vpack.c.b16 %v1585, %v1584
        %v1596 = vpack.c.b16 %v1587, %v1586
        %v1597 = vpack.c.b16 %v1589, %v1588
        %1606 = vmatprep.subr.bf16.mxu0 0
        %1607 = vmatpush1.bf16.msra.mxu0 %v1590
        %1608 = vmatprep.subr.bf16.mxu0 0
        %1609 = vmatpush1.bf16.msra.mxu0 %v1591
        %1610 = vmatprep.subr.bf16.mxu0 0
        %1611 = vmatpush1.bf16.msra.mxu0 %v1592
        %1612 = vmatprep.subr.bf16.mxu0 0
        %1613 = vmatpush1.bf16.msra.mxu0 %v1593
        %1614 = vmatprep.subr.bf16.mxu0 0
        %1615 = vmatpush1.bf16.msra.mxu0 %v1594
        %1616 = vmatprep.subr.bf16.mxu0 0
        %1617 = vmatpush1.bf16.msra.mxu0 %v1595
        %1618 = vmatprep.subr.bf16.mxu0 0
        %1619 = vmatpush1.bf16.msra.mxu0 %v1596
        %1620 = vmatprep.subr.bf16.mxu0 0
        %1621 = vmatpush1.bf16.msra.mxu0 %v1597
        %1622 = vmatprep.subr.bf16.mxu0 0
        %1623 = vmatpush1.bf16.msra.mxu0 0
        %1624 = vmatprep.subr.bf16.mxu0 0
        %1625 = vmatpush1.bf16.msra.mxu0 0
        %1626 = vmatprep.subr.bf16.mxu0 0
        %1627 = vmatpush1.bf16.msra.mxu0 0
        %1628 = vmatprep.subr.bf16.mxu0 0
        %1629 = vmatpush1.bf16.msra.mxu0 0
        %1630 = vmatprep.subr.bf16.mxu0 0
        %1631 = vmatpush1.bf16.msra.mxu0 0
        %1632 = vmatprep.subr.bf16.mxu0 0
        %1633 = vmatpush1.bf16.msra.mxu0 0
        %1634 = vmatprep.subr.bf16.mxu0 0
        %1635 = vmatpush1.bf16.msra.mxu0 0
        %1636 = vmatprep.subr.bf16.mxu0 0
        %1637 = vmatpush1.bf16.msra.mxu0 0
        %1638 = vmatprep.mubr.bf16.mxu0 0
        %1639 = vmatmul.mubr.bf16.gmra.mrb[0].mxu0 %v1556
        %v1640 = vpop.f32.mrb[0].mxu0
        %v1641 = vadd.f32 %v1524, %v1640
        %v1642 = vpop.f32.mrb[0].mxu0
        %v1643 = vpop.f32.mrb[0].mxu0
        %v1644 = vpop.f32.mrb[0].mxu0
        %1645 = vdwg.mxu0
        %1646 = vst [vmem:[%s247] sm:$0xff] %v1641
        %s1647 = sand.u32 %s159, 1
        %s1648 = scalar_lea.sflag [#allocation3], %s1647
        %s1649 = sand.u32 %s159, 1
        %s1650 = smul.addr %s1649, 8
        %s1651 = scalar_lea.vmem [#allocation2], %s1650
        // Predicated region
        $region45: #{tpu_custom_call.1} parent=43 // pred_check
          %p1652 = pneg %p169
        $region46: #{tpu_custom_call.1} parent=43 // pred_check_branch
          %1654 = sbr.rel (%p1652) target = $region48
        $region47: #{tpu_custom_call.1} parent=43 // pred_region
          %s1656 = ssub.s32 128, 128
          %1657 = vsyncadd %s1648, %s1656
          %s1658 = smul.addr %s20, 128
          %s1659 = scalar_lea.hbm %s6, %s1658
          %s1661 = sshll.u32 %s1651, 4
          %s1662 = int_to_ptr.vmem [resolvable:$true] %s1661
          %1664 = dma.vmem_to_hbm [thread:$0]  %s1662, 128, %s1659, %s1648
        $region48: #{tpu_custom_call.1} parent=43 // pred_fallthru
          _
      $region44: #{tpu_custom_call.1} parent=5 // pred_fallthru
        _
      %p1665 = scmp.le.s32.totalorder 2, %s15
      // Predicated region
      $region49: #{tpu_custom_call.1} parent=5 // pred_check
        %p1666 = pneg %p1665
      $region50: #{tpu_custom_call.1} parent=5 // pred_check_branch
        %1668 = sbr.rel (%p1666) target = $region52
      $region51: #{tpu_custom_call.1} parent=5 // pred_region
        %s1669 = ssub.s32 %s15, 2
        // Predicated region
        $region53: #{tpu_custom_call.1} parent=51 // pred_check
          %p1670 = pneg %p175
        $region54: #{tpu_custom_call.1} parent=51 // pred_check_branch
          %1672 = sbr.rel (%p1670) target = $region56
        $region55: #{tpu_custom_call.1} parent=51 // pred_region
          %s1673 = sand.u32 %s160, 1
          %s1674 = scalar_lea.sflag [#allocation3], %s1673
          %s1675 = sand.u32 %s160, 1
          %s1676 = smul.addr %s1675, 8
          %s1677 = scalar_lea.vmem [#allocation2], %s1676
          %1678 = dma.done %s1674, 128
        $region56: #{tpu_custom_call.1} parent=51 // pred_fallthru
          _
      $region52: #{tpu_custom_call.1} parent=5 // pred_fallthru
        _
    $region6: #{tpu_custom_call.1} parent=1 // loop_footer
      %s19 = sadd.s32 1, %s15
    $region7: #{tpu_custom_call.1} parent=1 // loop_footer_branch
      %14 = sbr.rel target = $region3
    $region8: #{tpu_custom_call.1} parent=1 // loop_exit
      _
    %1679 = vsyncpa [#allocation3], 1
    %s1680 = scalar_lea.sflag [#allocation3], 1
    %1681 = vsyncpa %s1680, 1

</llo_original>
